<compile_context>
chip_gen: v6e
topology: v6e:2x2x1
jax: 0.10.0
libtpu: 0.0.40
codegen_flags: <defaults>
</compile_context>

<pallas_src>
import functools

import jax
import jax.numpy as jnp
from jax.experimental import pallas as pl
from jax.experimental.pallas import tpu as pltpu


def _round_up(x: int, m: int) -> int:
    return pl.cdiv(x, m) * m


def _vmem_capacity_bytes() -> int:
    """Physical VMEM of the local chip; safe fallback = 64 MiB (v7x)."""
    try:
        return int(pltpu.get_tpu_info().vmem_capacity_bytes)
    except Exception:  # not a TPU / API unavailable
        return 64 * 1024 * 1024


def _mlp_kernel(x_ref, w1_ref, b1_ref, w2_ref, b2_ref, o_ref):
    compute_dtype = w1_ref.dtype                      # bf16 weights
    # First linear on the MXU: (TILE_N, D_in) @ (D_in, Hp) -> f32 accum.
    h = jnp.dot(x_ref[...].astype(compute_dtype), w1_ref[...],
                preferred_element_type=jnp.float32)
    # Bias-add + ReLU (clamp(min=0)) in f32 on the VPU.
    h = jnp.maximum(h + b1_ref[...], 0.0)
    # Second linear on the MXU: (TILE_N, Hp) @ (Hp, D_out) -> f32 accum.
    y = jnp.dot(h.astype(compute_dtype), w2_ref[...],
                preferred_element_type=jnp.float32)
    o_ref[...] = (y + b2_ref[...]).astype(o_ref.dtype)


def prepare_params(w1, b1, w2, b2, compute_dtype=jnp.bfloat16):
    """One-time conversion from PyTorch layout to kernel layout.

    w1: (H, D_in), b1: (H,), w2: (D_out, H), b2: (D_out,)  (torch.nn.Linear).
    Weights are transposed to (in, out), H zero-padded to a multiple of 128
    (lane-dense intermediate), cast to the MXU compute dtype.  D_out and D_in
    are deliberately left unpadded.  Biases stay f32 as (1, dim).
    """
    H, D_in = w1.shape
    D_out = w2.shape[0]
    Hp = _round_up(H, 128)

    w1_t = jnp.zeros((D_in, Hp), compute_dtype).at[:, :H].set(
        w1.T.astype(compute_dtype))
    w2_t = jnp.zeros((Hp, D_out), compute_dtype).at[:H, :].set(
        w2.T.astype(compute_dtype))
    b1_p = jnp.zeros((1, Hp), jnp.float32).at[0, :H].set(b1.astype(jnp.float32))
    b2_p = b2.astype(jnp.float32).reshape(1, D_out)
    return {"w1": w1_t, "b1": b1_p, "w2": w2_t, "b2": b2_p,
            "d_in": D_in, "h": H, "d_out": D_out}


@functools.partial(jax.jit, static_argnames=("tile_n", "single_buffer_weights"))
def two_layer_net(x, params, *, tile_n: int = 512,
                  single_buffer_weights: bool = True):
    """x: (N, D_in); params from prepare_params(). Returns (N, D_out) f32."""
    w1, b1, w2, b2 = params["w1"], params["b1"], params["w2"], params["b2"]
    N, D_in = x.shape
    Hp = w1.shape[1]
    D_out = w2.shape[1]
    assert w1.shape[0] == D_in

    # Batch tile: multiple of 16 (bf16 sublane pack).  Never larger than the
    # (padded) batch, and clamped so the grid has >= 2 steps (so both v7x
    # TensorCores get work under "parallel" semantics; extra grid steps are
    # ~0.35 us each on single-TC chips, i.e. noise).
    tile_n = max(16, min(tile_n, _round_up(N, 16)))
    if N > 16:
        tile_n = min(tile_n, _round_up(pl.cdiv(N, 2), 16))

    # --- VMEM budgeting (generation-aware) ------------------------------
    vmem_cap = _vmem_capacity_bytes()
    budget = vmem_cap - (8 << 20)          # leave headroom for compiler scratch
    w_buf = 1 if single_buffer_weights else 2

    def est_bytes(tn: int) -> int:
        return (
            2 * tn * D_in * x.dtype.itemsize                      # x tiles (x2 buf)
            + 2 * tn * D_out * 4                                  # y tiles (x2 buf)
            + w_buf * (w1.size * w1.dtype.itemsize
                       + w2.size * w2.dtype.itemsize
                       + b1.size * b1.dtype.itemsize
                       + b2.size * b2.dtype.itemsize)             # resident params
            + tn * Hp * 4                                         # h (f32)
            + tn * Hp * 2                                         # h (bf16 copy)
            + tn * D_out * 4                                      # y (f32 pre-store)
        )

    while tile_n > 16 and est_bytes(tile_n) > budget:
        tile_n = max(16, _round_up(tile_n // 2, 16))
    est = est_bytes(tile_n)
    # Always set the scoped VMEM limit explicitly (v5e's default is only
    # ~16 MiB); cap at the chip's physical capacity minus headroom.
    vmem_limit = int(min(budget, max(2 * est, 32 << 20)))

    n_pad = _round_up(N, tile_n)
    x_p = x if n_pad == N else jnp.pad(x, ((0, n_pad - N), (0, 0)))

    # Constant-index (resident) blocks only need a single buffer.
    if single_buffer_weights:
        def const_spec(shape):
            return pl.BlockSpec(shape, lambda i: (0, 0),
                                pipeline_mode=pl.Buffered(1))
    else:
        def const_spec(shape):
            return pl.BlockSpec(shape, lambda i: (0, 0))

    flops = 2 * n_pad * (D_in * Hp + Hp * D_out)
    bytes_accessed = (x_p.size * x_p.dtype.itemsize
                      + w1.size * w1.dtype.itemsize
                      + w2.size * w2.dtype.itemsize
                      + b1.size * b1.dtype.itemsize
                      + b2.size * b2.dtype.itemsize
                      + n_pad * D_out * 4)

    out = pl.pallas_call(
        _mlp_kernel,
        out_shape=jax.ShapeDtypeStruct((n_pad, D_out), jnp.float32),
        grid=(n_pad // tile_n,),
        in_specs=[
            pl.BlockSpec((tile_n, D_in), lambda i: (i, 0)),   # x: tiled over N
            const_spec((D_in, Hp)),                           # W1: resident
            const_spec((1, Hp)),                              # b1: resident
            const_spec((Hp, D_out)),                          # W2: resident
            const_spec((1, D_out)),                           # b2: resident
        ],
        out_specs=pl.BlockSpec((tile_n, D_out), lambda i: (i, 0)),
        compiler_params=pltpu.CompilerParams(
            dimension_semantics=("parallel",),
            vmem_limit_bytes=vmem_limit),
        cost_estimate=pl.CostEstimate(flops=flops, transcendentals=0,
                                      bytes_accessed=bytes_accessed),
    )(x_p, w1, b1, w2, b2)

    return out if n_pad == N else out[:N]


def init_params(key, D_in, H, D_out, dtype=jnp.float32):
    """Deterministic init mimicking torch.nn.Linear default (U[-1/sqrt(fan_in), +])."""
    k1, k2, k3, k4 = jax.random.split(key, 4)
    bound1 = 1.0 / jnp.sqrt(jnp.float32(D_in))
    bound2 = 1.0 / jnp.sqrt(jnp.float32(H))
    w1 = jax.random.uniform(k1, (H, D_in), dtype, -bound1, bound1)   # torch (out, in)
    b1 = jax.random.uniform(k2, (H,), dtype, -bound1, bound1)
    w2 = jax.random.uniform(k3, (D_out, H), dtype, -bound2, bound2)
    b2 = jax.random.uniform(k4, (D_out,), dtype, -bound2, bound2)
    return w1, b1, w2, b2


if __name__ == "__main__":
    # Small but tile-friendly shapes: batch=512, D_in=64, H=256, D_out=32.
    N, D_in, H, D_out = 512, 64, 256, 32
    key = jax.random.PRNGKey(0)
    kx, kp = jax.random.split(key)
    x = jax.random.normal(kx, (N, D_in), jnp.float32)
    w1, b1, w2, b2 = init_params(kp, D_in, H, D_out)

    # One-time parameter prep (transpose + H-pad + bf16 cast), hoisted out of
    # the per-call path.
    params = prepare_params(w1, b1, w2, b2)

    try:
        y = jax.block_until_ready(two_layer_net(x, params))
    except Exception:
        # Fallback if this jax build rejects pipeline_mode=pl.Buffered(1);
        # identical math, just double-buffered weights.
        y = jax.block_until_ready(
            two_layer_net(x, params, single_buffer_weights=False))

    assert y.shape == (N, D_out)

    # Reference with matched numerics: bf16 MXU operands, f32 accumulation,
    # f32 bias-add / ReLU.
    bf16 = jnp.bfloat16
    h_ref = jnp.maximum(
        jnp.dot(x.astype(bf16), w1.T.astype(bf16),
                preferred_element_type=jnp.float32) + b1, 0.0)
    y_ref = jnp.dot(h_ref.astype(bf16), w2.T.astype(bf16),
                    preferred_element_type=jnp.float32) + b2
    assert jnp.allclose(y, y_ref, atol=1e-2, rtol=1e-2), \
        float(jnp.max(jnp.abs(y - y_ref)))

    # Loose sanity check against the full-f32 PyTorch-equivalent math.
    y_f32 = jnp.maximum(x @ w1.T + b1, 0.0) @ w2.T + b2
    assert jnp.allclose(y, y_f32, atol=5e-2, rtol=5e-2)

    print("KERNEL_OK")
</pallas_src>

<mosaic_0001>
module attributes {stable_mosaic.version = 11 : i64} {
  func.func @_mlp_kernel(%arg0: i32, %arg1: memref<256x64xf32, #tpu.memory_space<vmem>>, %arg2: memref<64x256xbf16, #tpu.memory_space<vmem>>, %arg3: memref<1x256xf32, #tpu.memory_space<vmem>>, %arg4: memref<256x32xbf16, #tpu.memory_space<vmem>>, %arg5: memref<1x32xf32, #tpu.memory_space<vmem>>, %arg6: memref<256x32xf32, #tpu.memory_space<vmem>>) attributes {dimension_semantics = [#tpu.dimension_semantics<parallel>], iteration_bounds = array<i64: 2>, scalar_prefetch = 0 : i64, scratch_operands = 0 : i64, tpu.core_type = #tpu.core_type<tc>, window_params = [{transform_indices = @transform_0, window_bounds = array<i64: 256, 64>}, {pipeline_mode = #tpu.pipeline_mode<synchronous>, transform_indices = @transform_1, window_bounds = array<i64: 64, 256>}, {pipeline_mode = #tpu.pipeline_mode<synchronous>, transform_indices = @transform_2, window_bounds = array<i64: 1, 256>}, {pipeline_mode = #tpu.pipeline_mode<synchronous>, transform_indices = @transform_3, window_bounds = array<i64: 256, 32>}, {pipeline_mode = #tpu.pipeline_mode<synchronous>, transform_indices = @transform_4, window_bounds = array<i64: 1, 32>}, {transform_indices = @transform_5, window_bounds = array<i64: 256, 32>}]} {
    %c0 = arith.constant 0 : index
    %c0_0 = arith.constant 0 : index
    %0 = vector.load %arg1[%c0, %c0_0] : memref<256x64xf32, #tpu.memory_space<vmem>>, vector<256x64xf32>
    %1 = arith.truncf %0 : vector<256x64xf32> to vector<256x64xbf16>
    %c0_1 = arith.constant 0 : index
    %c0_2 = arith.constant 0 : index
    %2 = vector.load %arg2[%c0_1, %c0_2] : memref<64x256xbf16, #tpu.memory_space<vmem>>, vector<64x256xbf16>
    %cst = arith.constant dense<0.000000e+00> : vector<256x256xf32>
    %3 = tpu.matmul %1, %2, %cst {dimension_numbers = #tpu.dot_dimension_numbers<[1], [0], [0], [1], [0, 0, 1, 1], [], []>} : vector<256x64xbf16>, vector<64x256xbf16>, vector<256x256xf32> -> vector<256x256xf32>
    %c0_3 = arith.constant 0 : index
    %c0_4 = arith.constant 0 : index
    %4 = vector.load %arg3[%c0_3, %c0_4] : memref<1x256xf32, #tpu.memory_space<vmem>>, vector<1x256xf32>
    %5 = vector.broadcast %4 : vector<1x256xf32> to vector<256x256xf32>
    %6 = arith.addf %3, %5 : vector<256x256xf32>
    %cst_5 = arith.constant 0.000000e+00 : f32
    %7 = vector.broadcast %cst_5 : f32 to vector<256x256xf32>
    %8 = arith.maximumf %6, %7 : vector<256x256xf32>
    %9 = arith.truncf %8 : vector<256x256xf32> to vector<256x256xbf16>
    %c0_6 = arith.constant 0 : index
    %c0_7 = arith.constant 0 : index
    %10 = vector.load %arg4[%c0_6, %c0_7] : memref<256x32xbf16, #tpu.memory_space<vmem>>, vector<256x32xbf16>
    %cst_8 = arith.constant dense<0.000000e+00> : vector<256x32xf32>
    %11 = tpu.matmul %9, %10, %cst_8 {dimension_numbers = #tpu.dot_dimension_numbers<[1], [0], [0], [1], [0, 0, 1, 1], [], []>} : vector<256x256xbf16>, vector<256x32xbf16>, vector<256x32xf32> -> vector<256x32xf32>
    %c0_9 = arith.constant 0 : index
    %c0_10 = arith.constant 0 : index
    %12 = vector.load %arg5[%c0_9, %c0_10] : memref<1x32xf32, #tpu.memory_space<vmem>>, vector<1x32xf32>
    %13 = vector.broadcast %12 : vector<1x32xf32> to vector<256x32xf32>
    %14 = arith.addf %11, %13 : vector<256x32xf32>
    %c0_11 = arith.constant 0 : index
    %c0_12 = arith.constant 0 : index
    %15 = vector.load %arg6[%c0_11, %c0_12] : memref<256x32xf32, #tpu.memory_space<vmem>>, vector<256x32xf32>
    tpu.vector_store %arg6[%c0_11, %c0_12], %14 {strides = array<i32>} : memref<256x32xf32, #tpu.memory_space<vmem>>, vector<256x32xf32>,
    return
  }
  func.func @transform_0(%arg0: i32) -> (i32, i32) {
    %c0_i32 = arith.constant 0 : i32
    %c0_i32_0 = arith.constant 0 : i32
    return %arg0, %c0_i32 : i32, i32
  }
  func.func @transform_1(%arg0: i32) -> (i32, i32) {
    %c0_i32 = arith.constant 0 : i32
    %c0_i32_0 = arith.constant 0 : i32
    %c0_i32_1 = arith.constant 0 : i32
    return %c0_i32, %c0_i32_0 : i32, i32
  }
  func.func @transform_2(%arg0: i32) -> (i32, i32) {
    %c0_i32 = arith.constant 0 : i32
    %c0_i32_0 = arith.constant 0 : i32
    %c0_i32_1 = arith.constant 0 : i32
    return %c0_i32, %c0_i32_0 : i32, i32
  }
  func.func @transform_3(%arg0: i32) -> (i32, i32) {
    %c0_i32 = arith.constant 0 : i32
    %c0_i32_0 = arith.constant 0 : i32
    %c0_i32_1 = arith.constant 0 : i32
    return %c0_i32, %c0_i32_0 : i32, i32
  }
  func.func @transform_4(%arg0: i32) -> (i32, i32) {
    %c0_i32 = arith.constant 0 : i32
    %c0_i32_0 = arith.constant 0 : i32
    %c0_i32_1 = arith.constant 0 : i32
    return %c0_i32, %c0_i32_0 : i32, i32
  }
  func.func @transform_5(%arg0: i32) -> (i32, i32) {
    %c0_i32 = arith.constant 0 : i32
    %c0_i32_0 = arith.constant 0 : i32
    return %arg0, %c0_i32 : i32, i32
  }
}

module attributes {stable_mosaic.version = 11 : i64} {
  func.func @_mlp_kernel(%arg0: i32, %arg1: memref<256x64xf32, #tpu.memory_space<vmem>>, %arg2: memref<64x256xbf16, #tpu.memory_space<vmem>>, %arg3: memref<1x256xf32, #tpu.memory_space<vmem>>, %arg4: memref<256x32xbf16, #tpu.memory_space<vmem>>, %arg5: memref<1x32xf32, #tpu.memory_space<vmem>>, %arg6: memref<256x32xf32, #tpu.memory_space<vmem>>) attributes {dimension_semantics = [#tpu.dimension_semantics<parallel>], iteration_bounds = array<i64: 2>, scalar_prefetch = 0 : i64, scratch_operands = 0 : i64, tpu.core_type = #tpu.core_type<tc>, window_params = [{transform_indices = @transform_0, window_bounds = array<i64: 256, 64>}, {pipeline_mode = #tpu.pipeline_mode<synchronous>, transform_indices = @transform_1, window_bounds = array<i64: 64, 256>}, {pipeline_mode = #tpu.pipeline_mode<synchronous>, transform_indices = @transform_2, window_bounds = array<i64: 1, 256>}, {pipeline_mode = #tpu.pipeline_mode<synchronous>, transform_indices = @transform_3, window_bounds = array<i64: 256, 32>}, {pipeline_mode = #tpu.pipeline_mode<synchronous>, transform_indices = @transform_4, window_bounds = array<i64: 1, 32>}, {transform_indices = @transform_5, window_bounds = array<i64: 256, 32>}]} {
    %c0 = arith.constant 0 : index
    %c0_0 = arith.constant 0 : index
    %0 = vector.load %arg1[%c0, %c0_0] : memref<256x64xf32, #tpu.memory_space<vmem>>, vector<256x64xf32>
    %1 = arith.truncf %0 : vector<256x64xf32> to vector<256x64xbf16>
    %c0_1 = arith.constant 0 : index
    %c0_2 = arith.constant 0 : index
    %2 = vector.load %arg2[%c0_1, %c0_2] : memref<64x256xbf16, #tpu.memory_space<vmem>>, vector<64x256xbf16>
    %cst = arith.constant dense<0.000000e+00> : vector<256x256xf32>
    %3 = tpu.matmul %1, %2, %cst {dimension_numbers = #tpu.dot_dimension_numbers<[1], [0], [0], [1], [0, 0, 1, 1], [], []>} : vector<256x64xbf16>, vector<64x256xbf16>, vector<256x256xf32> -> vector<256x256xf32>
    %c0_3 = arith.constant 0 : index
    %c0_4 = arith.constant 0 : index
    %4 = vector.load %arg3[%c0_3, %c0_4] : memref<1x256xf32, #tpu.memory_space<vmem>>, vector<1x256xf32>
    %5 = vector.broadcast %4 : vector<1x256xf32> to vector<256x256xf32>
    %6 = arith.addf %3, %5 : vector<256x256xf32>
    %cst_5 = arith.constant 0.000000e+00 : f32
    %7 = vector.broadcast %cst_5 : f32 to vector<256x256xf32>
    %8 = arith.maximumf %6, %7 : vector<256x256xf32>
    %9 = arith.truncf %8 : vector<256x256xf32> to vector<256x256xbf16>
    %c0_6 = arith.constant 0 : index
    %c0_7 = arith.constant 0 : index
    %10 = vector.load %arg4[%c0_6, %c0_7] : memref<256x32xbf16, #tpu.memory_space<vmem>>, vector<256x32xbf16>
    %cst_8 = arith.constant dense<0.000000e+00> : vector<256x32xf32>
    %11 = tpu.matmul %9, %10, %cst_8 {dimension_numbers = #tpu.dot_dimension_numbers<[1], [0], [0], [1], [0, 0, 1, 1], [], []>} : vector<256x256xbf16>, vector<256x32xbf16>, vector<256x32xf32> -> vector<256x32xf32>
    %c0_9 = arith.constant 0 : index
    %c0_10 = arith.constant 0 : index
    %12 = vector.load %arg5[%c0_9, %c0_10] : memref<1x32xf32, #tpu.memory_space<vmem>>, vector<1x32xf32>
    %13 = vector.broadcast %12 : vector<1x32xf32> to vector<256x32xf32>
    %14 = arith.addf %11, %13 : vector<256x32xf32>
    %c0_11 = arith.constant 0 : index
    %c0_12 = arith.constant 0 : index
    %15 = vector.load %arg6[%c0_11, %c0_12] : memref<256x32xf32, #tpu.memory_space<vmem>>, vector<256x32xf32>
    tpu.vector_store %arg6[%c0_11, %c0_12], %14 {strides = array<i32>} : memref<256x32xf32, #tpu.memory_space<vmem>>, vector<256x32xf32>,
    return
  }
  func.func @transform_0(%arg0: i32) -> (i32, i32) {
    %c0_i32 = arith.constant 0 : i32
    %c0_i32_0 = arith.constant 0 : i32
    return %arg0, %c0_i32 : i32, i32
  }
  func.func @transform_1(%arg0: i32) -> (i32, i32) {
    %c0_i32 = arith.constant 0 : i32
    %c0_i32_0 = arith.constant 0 : i32
    %c0_i32_1 = arith.constant 0 : i32
    return %c0_i32, %c0_i32_0 : i32, i32
  }
  func.func @transform_2(%arg0: i32) -> (i32, i32) {
    %c0_i32 = arith.constant 0 : i32
    %c0_i32_0 = arith.constant 0 : i32
    %c0_i32_1 = arith.constant 0 : i32
    return %c0_i32, %c0_i32_0 : i32, i32
  }
  func.func @transform_3(%arg0: i32) -> (i32, i32) {
    %c0_i32 = arith.constant 0 : i32
    %c0_i32_0 = arith.constant 0 : i32
    %c0_i32_1 = arith.constant 0 : i32
    return %c0_i32, %c0_i32_0 : i32, i32
  }
  func.func @transform_4(%arg0: i32) -> (i32, i32) {
    %c0_i32 = arith.constant 0 : i32
    %c0_i32_0 = arith.constant 0 : i32
    %c0_i32_1 = arith.constant 0 : i32
    return %c0_i32, %c0_i32_0 : i32, i32
  }
  func.func @transform_5(%arg0: i32) -> (i32, i32) {
    %c0_i32 = arith.constant 0 : i32
    %c0_i32_0 = arith.constant 0 : i32
    return %arg0, %c0_i32 : i32, i32
  }
}

</mosaic_0001>

<llo_original>
// kernel: two_layer_net.1
$region0: #{two_layer_net.1}
  #allocation0 [shape = 'u32[]', space=smem, size = 0x4, offset = 0x4, fixed_abs, tag = 'smem constant byte address 0x4 - core index']
  #allocation1 [shape = 'u32[144,128]{1,0:T(1,128)}', space=vmem, size = 0x12000, scoped, tag = 'internal scratch']
  %s0 = inlined_call_operand.vmem [shape: f32[512,64], index: 0, kind: input, shape index: {}]
  %s1 = inlined_call_operand.vmem [shape: bf16[64,256], index: 1, kind: input, shape index: {}]
  %s2 = inlined_call_operand.vmem [shape: f32[1,256], index: 2, kind: input, shape index: {}]
  %s3 = inlined_call_operand.vmem [shape: bf16[256,32], index: 3, kind: input, shape index: {}]
  %s4 = inlined_call_operand.vmem [shape: f32[1,32], index: 4, kind: input, shape index: {}]
  %s5 = inlined_call_operand.vmem [shape: f32[512,32], index: 5, kind: output, shape index: {}]
  %s6 = sld [smem:[#allocation0]]
  $region53: #{two_layer_net.1} parent=0
    _
  %s8 = ssub.s32 1, %s6
  %s9 = scalar_select 0, %s8, %s6
  loop: start=0, step=1, limit=4
  $region2: #{two_layer_net.1} parent=0 // loop_pre_header
    _
  $region3: #{two_layer_net.1} parent=0 // loop_header
    %s11 = sphi 0, %s15
    %p12 = scmp.ge.s32.totalorder %s11, 4
    %s21 = sphi 0, %s23
    %s24 = sphi 0, %s21
    %s25 = sphi 0, %s24
    %s41 = sphi 0, %s25
    %s45 = sphi 0, %s45
    %s47 = sphi 0, %s45
    %s48 = sphi 0, %s47
    %s62 = sphi 0, %s48
    %s66 = sphi 0, %s66
    %s68 = sphi 0, %s66
    %s69 = sphi 0, %s68
    %s83 = sphi 0, %s69
    %s87 = sphi 0, %s87
    %s89 = sphi 0, %s87
    %s90 = sphi 0, %s89
    %s104 = sphi 0, %s90
    %s108 = sphi 0, %s108
    %s110 = sphi 0, %s108
    %s111 = sphi 0, %s110
    %s125 = sphi 0, %s111
    %s131 = sphi 0, %s133
    %s134 = sphi 0, %s131
    %s135 = sphi 0, %s134
    %s151 = sphi 0, %s135
  $region4: #{two_layer_net.1} parent=0 // loop_header_branch
    %14 = sbr.rel (%p12) target = $region8
  $region5: #{two_layer_net.1} parent=0 // loop_body
    %s16 = ssub.s32 %s11, 1
    %s17 = ssub.s32 %s11, 2
    %s18 = sadd.s32 %s11, 1
    %s19 = ssub.s32 %s11, %s18
    %p20 = scmp.eq.s32.totalorder %s19, 0
    %s22 = sadd.s32 %s21, 1
    %s23 = scalar_select %p20, %s21, %s22
    %p26 = pneg %p20
    %p27 = scmp.eq.s32.totalorder %s11, 1
    %p28 = por %p26, %p27
    %p29 = scmp.ne.s32.totalorder %s21, %s24
    %p30 = scmp.eq.s32.totalorder %s11, 0
    %p31 = por %p29, %p30
    %p32 = scmp.ne.s32.totalorder %s21, %s24
    %p33 = scmp.eq.s32.totalorder %s16, 1
    %p34 = por %p32, %p33
    %p35 = scmp.ne.s32.totalorder %s24, %s25
    %p36 = scmp.eq.s32.totalorder %s16, 0
    %p37 = por %p35, %p36
    %p38 = scmp.ne.s32.totalorder %s24, %s25
    %p39 = scmp.eq.s32.totalorder %s17, 1
    %p40 = por %p38, %p39
    %p42 = scmp.ne.s32.totalorder %s25, %s41
    %p43 = scmp.eq.s32.totalorder %s17, 0
    %p44 = por %p42, %p43
    %s46 = sadd.s32 %s45, 1
    %p49 = scmp.eq.s32.totalorder %s11, 1
    %p50 = scmp.ne.s32.totalorder %s45, %s47
    %p51 = scmp.eq.s32.totalorder %s11, 0
    %p52 = por %p50, %p51
    %p53 = scmp.ne.s32.totalorder %s45, %s47
    %p54 = scmp.eq.s32.totalorder %s16, 1
    %p55 = por %p53, %p54
    %p56 = scmp.ne.s32.totalorder %s47, %s48
    %p57 = scmp.eq.s32.totalorder %s16, 0
    %p58 = por %p56, %p57
    %p59 = scmp.ne.s32.totalorder %s47, %s48
    %p60 = scmp.eq.s32.totalorder %s17, 1
    %p61 = por %p59, %p60
    %p63 = scmp.ne.s32.totalorder %s48, %s62
    %p64 = scmp.eq.s32.totalorder %s17, 0
    %p65 = por %p63, %p64
    %s67 = sadd.s32 %s66, 1
    %p70 = scmp.eq.s32.totalorder %s11, 1
    %p71 = scmp.ne.s32.totalorder %s66, %s68
    %p72 = scmp.eq.s32.totalorder %s11, 0
    %p73 = por %p71, %p72
    %p74 = scmp.ne.s32.totalorder %s66, %s68
    %p75 = scmp.eq.s32.totalorder %s16, 1
    %p76 = por %p74, %p75
    %p77 = scmp.ne.s32.totalorder %s68, %s69
    %p78 = scmp.eq.s32.totalorder %s16, 0
    %p79 = por %p77, %p78
    %p80 = scmp.ne.s32.totalorder %s68, %s69
    %p81 = scmp.eq.s32.totalorder %s17, 1
    %p82 = por %p80, %p81
    %p84 = scmp.ne.s32.totalorder %s69, %s83
    %p85 = scmp.eq.s32.totalorder %s17, 0
    %p86 = por %p84, %p85
    %s88 = sadd.s32 %s87, 1
    %p91 = scmp.eq.s32.totalorder %s11, 1
    %p92 = scmp.ne.s32.totalorder %s87, %s89
    %p93 = scmp.eq.s32.totalorder %s11, 0
    %p94 = por %p92, %p93
    %p95 = scmp.ne.s32.totalorder %s87, %s89
    %p96 = scmp.eq.s32.totalorder %s16, 1
    %p97 = por %p95, %p96
    %p98 = scmp.ne.s32.totalorder %s89, %s90
    %p99 = scmp.eq.s32.totalorder %s16, 0
    %p100 = por %p98, %p99
    %p101 = scmp.ne.s32.totalorder %s89, %s90
    %p102 = scmp.eq.s32.totalorder %s17, 1
    %p103 = por %p101, %p102
    %p105 = scmp.ne.s32.totalorder %s90, %s104
    %p106 = scmp.eq.s32.totalorder %s17, 0
    %p107 = por %p105, %p106
    %s109 = sadd.s32 %s108, 1
    %p112 = scmp.eq.s32.totalorder %s11, 1
    %p113 = scmp.ne.s32.totalorder %s108, %s110
    %p114 = scmp.eq.s32.totalorder %s11, 0
    %p115 = por %p113, %p114
    %p116 = scmp.ne.s32.totalorder %s108, %s110
    %p117 = scmp.eq.s32.totalorder %s16, 1
    %p118 = por %p116, %p117
    %p119 = scmp.ne.s32.totalorder %s110, %s111
    %p120 = scmp.eq.s32.totalorder %s16, 0
    %p121 = por %p119, %p120
    %p122 = scmp.ne.s32.totalorder %s110, %s111
    %p123 = scmp.eq.s32.totalorder %s17, 1
    %p124 = por %p122, %p123
    %p126 = scmp.ne.s32.totalorder %s111, %s125
    %p127 = scmp.eq.s32.totalorder %s17, 0
    %p128 = por %p126, %p127
    %s129 = ssub.s32 %s11, %s18
    %p130 = scmp.eq.s32.totalorder %s129, 0
    %s132 = sadd.s32 %s131, 1
    %s133 = scalar_select %p130, %s131, %s132
    %p136 = pneg %p130
    %p137 = scmp.eq.s32.totalorder %s11, 1
    %p138 = por %p136, %p137
    %p139 = scmp.ne.s32.totalorder %s131, %s134
    %p140 = scmp.eq.s32.totalorder %s11, 0
    %p141 = por %p139, %p140
    %p142 = scmp.ne.s32.totalorder %s131, %s134
    %p143 = scmp.eq.s32.totalorder %s16, 1
    %p144 = por %p142, %p143
    %p145 = scmp.ne.s32.totalorder %s134, %s135
    %p146 = scmp.eq.s32.totalorder %s16, 0
    %p147 = por %p145, %p146
    %p148 = scmp.ne.s32.totalorder %s134, %s135
    %p149 = scmp.eq.s32.totalorder %s17, 1
    %p150 = por %p148, %p149
    %p152 = scmp.ne.s32.totalorder %s135, %s151
    %p153 = scmp.eq.s32.totalorder %s17, 0
    %p154 = por %p152, %p153
    %p155 = scmp.le.s32.totalorder 1, %s11
    %p156 = scmp.lt.s32.totalorder %s11, 3
    %p157 = pnand %p155, %p156
    %p158 = pneg %p157
    // Predicated region
    $region9: #{two_layer_net.1} parent=5 // pred_check
      _
    $region10: #{two_layer_net.1} parent=5 // pred_check_branch
      %160 = sbr.rel (%p157) target = $region12
    $region11: #{two_layer_net.1} parent=5 // pred_region
      %s161 = ssub.s32 %s11, 1
      // Predicated region
      $region13: #{two_layer_net.1} parent=11 // pred_check
        %p162 = pneg %p58
      $region14: #{two_layer_net.1} parent=11 // pred_check_branch
        %164 = sbr.rel (%p162) target = $region16
      $region15: #{two_layer_net.1} parent=11 // pred_region
        _
      $region16: #{two_layer_net.1} parent=11 // pred_fallthru
        _
      // Predicated region
      $region17: #{two_layer_net.1} parent=11 // pred_check
        %p165 = pneg %p79
      $region18: #{two_layer_net.1} parent=11 // pred_check_branch
        %167 = sbr.rel (%p165) target = $region20
      $region19: #{two_layer_net.1} parent=11 // pred_region
        _
      $region20: #{two_layer_net.1} parent=11 // pred_fallthru
        _
      // Predicated region
      $region21: #{two_layer_net.1} parent=11 // pred_check
        %p168 = pneg %p100
      $region22: #{two_layer_net.1} parent=11 // pred_check_branch
        %170 = sbr.rel (%p168) target = $region24
      $region23: #{two_layer_net.1} parent=11 // pred_region
        _
      $region24: #{two_layer_net.1} parent=11 // pred_fallthru
        _
      // Predicated region
      $region25: #{two_layer_net.1} parent=11 // pred_check
        %p171 = pneg %p121
      $region26: #{two_layer_net.1} parent=11 // pred_check_branch
        %173 = sbr.rel (%p171) target = $region28
      $region27: #{two_layer_net.1} parent=11 // pred_region
        _
      $region28: #{two_layer_net.1} parent=11 // pred_fallthru
        _
    $region12: #{two_layer_net.1} parent=5 // pred_fallthru
      _
    %p174 = scmp.lt.s32.totalorder %s11, 2
    // Predicated region
    $region29: #{two_layer_net.1} parent=5 // pred_check
      %p175 = pneg %p174
    $region30: #{two_layer_net.1} parent=5 // pred_check_branch
      %177 = sbr.rel (%p175) target = $region32
    $region31: #{two_layer_net.1} parent=5 // pred_region
      // Predicated region
      $region33: #{two_layer_net.1} parent=31 // pred_check
        %p178 = pneg %p31
      $region34: #{two_layer_net.1} parent=31 // pred_check_branch
        %180 = sbr.rel (%p178) target = $region36
      $region35: #{two_layer_net.1} parent=31 // pred_region
        %s181 = smul.u32 32, %s11
        %p182 = scmp.lt.s32.totalorder %s181, 63
        %s183 = scalar_select %p182, %s181, 63
        %s184 = smul.addr %s183, 8
        %s185 = scalar_lea.vmem %s0, %s184
        %s186 = smul.u32 32, %s11
      $region36: #{two_layer_net.1} parent=31 // pred_fallthru
        _
    $region32: #{two_layer_net.1} parent=5 // pred_fallthru
      _
    %p187 = scmp.le.s32.totalorder 1, %s11
    %p188 = scmp.lt.s32.totalorder %s11, 3
    %p189 = pnand %p187, %p188
    %p190 = pneg %p189
    // Predicated region
    $region37: #{two_layer_net.1} parent=5 // pred_check
      _
    $region38: #{two_layer_net.1} parent=5 // pred_check_branch
      %192 = sbr.rel (%p189) target = $region40
    $region39: #{two_layer_net.1} parent=5 // pred_region
      %s193 = ssub.s32 %s11, 1
      %s194 = smul.u32 32, %s16
      %p195 = scmp.lt.s32.totalorder %s194, 63
      %s196 = scalar_select %p195, %s194, 63
      %s197 = smul.addr %s196, 8
      %s198 = scalar_lea.vmem %s0, %s197
      %p199 = pneg %p37
      %p200 = pneg %p34
      %p201 = pneg %p58
      %p202 = pneg %p55
      %p203 = pneg %p79
      %p204 = pneg %p76
      %p205 = pneg %p100
      %p206 = pneg %p97
      %p207 = pneg %p121
      %p208 = pneg %p118
      %p209 = pneg %p147
      %p210 = pneg %p144
      %s211 = smul.u32 32, %s16
      %p212 = scmp.lt.s32.totalorder %s211, 63
      %s213 = scalar_select %p212, %s211, 63
      %s214 = smul.addr %s213, 8
      %s215 = scalar_lea.vmem %s5, %s214
      %s216 = smul.u32 32, %s16
      %p217 = scmp.lt.s32.totalorder %s216, 63
      %s218 = scalar_select %p217, %s216, 63
      %s219 = smul.addr %s218, 8
      %s220 = scalar_lea.vmem %s0, %s219
      %s221 = smul.u32 32, %s16
      %s222 = smul.u32 32, %s16
      %p223 = scmp.lt.s32.totalorder %s222, 63
      %s224 = scalar_select %p223, %s222, 63
      %s225 = smul.addr %s224, 8
      %s226 = scalar_lea.vmem %s5, %s225
      %s227 = smul.u32 32, %s16
      %v229 = vld [vmem:[%s220] sm:$0xff]
      %v230 = vld [vmem:[%s220 + $0x8] sm:$0xff]
      %v231 = vld [vmem:[%s220 + $0x10] sm:$0xff]
      %v232 = vld [vmem:[%s220 + $0x18] sm:$0xff]
      %v233 = vld [vmem:[%s220 + $0x20] sm:$0xff]
      %v234 = vld [vmem:[%s220 + $0x28] sm:$0xff]
      %v235 = vld [vmem:[%s220 + $0x30] sm:$0xff]
      %v236 = vld [vmem:[%s220 + $0x38] sm:$0xff]
      %v237 = vld [vmem:[%s220 + $0x40] sm:$0xff]
      %v238 = vld [vmem:[%s220 + $0x48] sm:$0xff]
      %v239 = vld [vmem:[%s220 + $0x50] sm:$0xff]
      %v240 = vld [vmem:[%s220 + $0x58] sm:$0xff]
      %v241 = vld [vmem:[%s220 + $0x60] sm:$0xff]
      %v242 = vld [vmem:[%s220 + $0x68] sm:$0xff]
      %v243 = vld [vmem:[%s220 + $0x70] sm:$0xff]
      %v244 = vld [vmem:[%s220 + $0x78] sm:$0xff]
      %v245 = vld [vmem:[%s220 + $0x80] sm:$0xff]
      %v246 = vld [vmem:[%s220 + $0x88] sm:$0xff]
      %v247 = vld [vmem:[%s220 + $0x90] sm:$0xff]
      %v248 = vld [vmem:[%s220 + $0x98] sm:$0xff]
      %v249 = vld [vmem:[%s220 + $0xa0] sm:$0xff]
      %v250 = vld [vmem:[%s220 + $0xa8] sm:$0xff]
      %v251 = vld [vmem:[%s220 + $0xb0] sm:$0xff]
      %v252 = vld [vmem:[%s220 + $0xb8] sm:$0xff]
      %v253 = vld [vmem:[%s220 + $0xc0] sm:$0xff]
      %v254 = vld [vmem:[%s220 + $0xc8] sm:$0xff]
      %v255 = vld [vmem:[%s220 + $0xd0] sm:$0xff]
      %v256 = vld [vmem:[%s220 + $0xd8] sm:$0xff]
      %v257 = vld [vmem:[%s220 + $0xe0] sm:$0xff]
      %v258 = vld [vmem:[%s220 + $0xe8] sm:$0xff]
      %v259 = vld [vmem:[%s220 + $0xf0] sm:$0xff]
      %v260 = vld [vmem:[%s220 + $0xf8] sm:$0xff]
      %v261 = vpack.c.bf16 %v230, %v229
      %v262 = vpack.c.bf16 %v232, %v231
      %v263 = vpack.c.bf16 %v234, %v233
      %v264 = vpack.c.bf16 %v236, %v235
      %v265 = vpack.c.bf16 %v238, %v237
      %v266 = vpack.c.bf16 %v240, %v239
      %v267 = vpack.c.bf16 %v242, %v241
      %v268 = vpack.c.bf16 %v244, %v243
      %v269 = vpack.c.bf16 %v246, %v245
      %v270 = vpack.c.bf16 %v248, %v247
      %v271 = vpack.c.bf16 %v250, %v249
      %v272 = vpack.c.bf16 %v252, %v251
      %v273 = vpack.c.bf16 %v254, %v253
      %v274 = vpack.c.bf16 %v256, %v255
      %v275 = vpack.c.bf16 %v258, %v257
      %v276 = vpack.c.bf16 %v260, %v259
      %v277 = vld [vmem:[%s1] sm:$0xff]
      %v278 = vld [vmem:[%s1 + $0x8] sm:$0xff]
      %v279 = vld [vmem:[%s1 + $0x10] sm:$0xff]
      %v280 = vld [vmem:[%s1 + $0x18] sm:$0xff]
      %v281 = vld [vmem:[%s1 + $0x20] sm:$0xff]
      %v282 = vld [vmem:[%s1 + $0x28] sm:$0xff]
      %v283 = vld [vmem:[%s1 + $0x30] sm:$0xff]
      %v284 = vld [vmem:[%s1 + $0x38] sm:$0xff]
      %v285 = vld [vmem:[%s2] sm:$0x3]
      %v287 = vlaneseq
      %v288 = vshrl.u32 %v287, 7
      %v289 = vsub.s32 0, %v288
      %v290 = vrot.slane %v285, %v289
      %v291 = vlaneseq
      %v292 = vshrl.u32 %v291, 7
      %v293 = vsub.s32 1, %v292
      %v294 = vrot.slane %v285, %v293
      %v305 = vunpack.c.l.b16 %v277
      %v306 = vunpack.c.h.b16 %v277
      %v307 = vunpack.c.l.b16 %v278
      %v308 = vunpack.c.h.b16 %v278
      %v309 = vunpack.c.l.b16 %v279
      %v310 = vunpack.c.h.b16 %v279
      %v311 = vunpack.c.l.b16 %v280
      %v312 = vunpack.c.h.b16 %v280
      %v313 = vunpack.c.l.b16 %v281
      %v314 = vunpack.c.h.b16 %v281
      %v315 = vunpack.c.l.b16 %v282
      %v316 = vunpack.c.h.b16 %v282
      %v317 = vunpack.c.l.b16 %v283
      %v318 = vunpack.c.h.b16 %v283
      %v319 = vunpack.c.l.b16 %v284
      %v320 = vunpack.c.h.b16 %v284
      %v321 = vpack.c.b16 %v307, %v305
      %v322 = vpack.c.b16 %v308, %v306
      %v323 = vpack.c.b16 %v311, %v309
      %v324 = vpack.c.b16 %v312, %v310
      %v325 = vpack.c.b16 %v315, %v313
      %v326 = vpack.c.b16 %v316, %v314
      %v327 = vpack.c.b16 %v319, %v317
      %v328 = vpack.c.b16 %v320, %v318
      %vm337 = vcmask 523264
      %v339 = vsel %vm337, %v261, 0
      %v342 = vsel %vm337, %v262, 0
      %v345 = vsel %vm337, %v263, 0
      %v348 = vsel %vm337, %v264, 0
      %v351 = vsel %vm337, %v265, 0
      %v354 = vsel %vm337, %v266, 0
      %v357 = vsel %vm337, %v267, 0
      %v360 = vsel %vm337, %v268, 0
      %v363 = vsel %vm337, %v269, 0
      %v366 = vsel %vm337, %v270, 0
      %v369 = vsel %vm337, %v271, 0
      %v372 = vsel %vm337, %v272, 0
      %v375 = vsel %vm337, %v273, 0
      %v378 = vsel %vm337, %v274, 0
      %v381 = vsel %vm337, %v275, 0
      %v384 = vsel %vm337, %v276, 0
      %386 = vmatprep.subr.bf16.mxu0 0
      %387 = vmatpush1.bf16.msra.mxu0 0
      %388 = vmatprep.subr.bf16.mxu0 0
      %389 = vmatpush1.bf16.msra.mxu0 0
      %390 = vmatprep.subr.bf16.mxu0 0
      %391 = vmatpush1.bf16.msra.mxu0 0
      %392 = vmatprep.subr.bf16.mxu0 0
      %393 = vmatpush1.bf16.msra.mxu0 0
      %394 = vmatprep.subr.bf16.mxu0 %v328
      %395 = vmatpush1.bf16.msra.mxu0 %v327
      %396 = vmatprep.subr.bf16.mxu0 %v326
      %397 = vmatpush1.bf16.msra.mxu0 %v325
      %398 = vmatprep.subr.bf16.mxu0 %v324
      %399 = vmatpush1.bf16.msra.mxu0 %v323
      %400 = vmatprep.subr.bf16.mxu0 %v322
      %401 = vmatpush1.bf16.msra.mxu0 %v321
      %402 = vmatprep.subr.bf16.mxu0 0
      %403 = vmatpush2.bf16.msra.mxu0 0
      %404 = vmatprep.subr.bf16.mxu0 0
      %405 = vmatpush2.bf16.msra.mxu0 0
      %406 = vmatprep.subr.bf16.mxu0 0
      %407 = vmatpush2.bf16.msra.mxu0 0
      %408 = vmatprep.subr.bf16.mxu0 0
      %409 = vmatpush2.bf16.msra.mxu0 0
      %410 = vmatprep.subr.bf16.mxu0 0
      %411 = vmatpush2.bf16.msra.mxu0 0
      %412 = vmatprep.subr.bf16.mxu0 0
      %413 = vmatpush2.bf16.msra.mxu0 0
      %414 = vmatprep.subr.bf16.mxu0 0
      %415 = vmatpush2.bf16.msra.mxu0 0
      %416 = vmatprep.subr.bf16.mxu0 0
      %417 = vmatpush2.bf16.msra.mxu0 0
      %418 = vmatprep.mubr.bf16.mxu0 0
      %419 = vmatmul.mubr.bf16.gmra.mxu0 %v339
      %v420 = vpop.f32.mrf.mxu0
      %v421 = vadd.f32 %v290, %v420
      %v422 = vpop.f32.mrf.mxu0
      %v423 = vadd.f32 %v294, %v422
      %v424 = vpop.f32.mrf.mxu0
      %v425 = vadd.f32 %v290, %v424
      %v426 = vpop.f32.mrf.mxu0
      %v427 = vadd.f32 %v294, %v426
      %428 = vmatprep.mubr.bf16.mxu0 0
      %429 = vmatmul.mubr.bf16.gmra.mxu0 %v342
      %v430 = vpop.f32.mrf.mxu0
      %v431 = vadd.f32 %v290, %v430
      %v432 = vpop.f32.mrf.mxu0
      %v433 = vadd.f32 %v294, %v432
      %v434 = vpop.f32.mrf.mxu0
      %v435 = vadd.f32 %v290, %v434
      %v436 = vpop.f32.mrf.mxu0
      %v437 = vadd.f32 %v294, %v436
      %438 = vmatprep.mubr.bf16.mxu0 0
      %439 = vmatmul.mubr.bf16.gmra.mxu0 %v345
      %v440 = vpop.f32.mrf.mxu0
      %v441 = vadd.f32 %v290, %v440
      %v442 = vpop.f32.mrf.mxu0
      %v443 = vadd.f32 %v294, %v442
      %v444 = vpop.f32.mrf.mxu0
      %v445 = vadd.f32 %v290, %v444
      %v446 = vpop.f32.mrf.mxu0
      %v447 = vadd.f32 %v294, %v446
      %448 = vmatprep.mubr.bf16.mxu0 0
      %449 = vmatmul.mubr.bf16.gmra.mxu0 %v348
      %v450 = vpop.f32.mrf.mxu0
      %v451 = vadd.f32 %v290, %v450
      %v452 = vpop.f32.mrf.mxu0
      %v453 = vadd.f32 %v294, %v452
      %v454 = vpop.f32.mrf.mxu0
      %v455 = vadd.f32 %v290, %v454
      %v456 = vpop.f32.mrf.mxu0
      %v457 = vadd.f32 %v294, %v456
      %458 = vmatprep.mubr.bf16.mxu0 0
      %459 = vmatmul.mubr.bf16.gmra.mxu0 %v351
      %v460 = vpop.f32.mrf.mxu0
      %v461 = vadd.f32 %v290, %v460
      %v462 = vpop.f32.mrf.mxu0
      %v463 = vadd.f32 %v294, %v462
      %v464 = vpop.f32.mrf.mxu0
      %v465 = vadd.f32 %v290, %v464
      %v466 = vpop.f32.mrf.mxu0
      %v467 = vadd.f32 %v294, %v466
      %468 = vmatprep.mubr.bf16.mxu0 0
      %469 = vmatmul.mubr.bf16.gmra.mxu0 %v354
      %v470 = vpop.f32.mrf.mxu0
      %v471 = vadd.f32 %v290, %v470
      %v472 = vpop.f32.mrf.mxu0
      %v473 = vadd.f32 %v294, %v472
      %v474 = vpop.f32.mrf.mxu0
      %v475 = vadd.f32 %v290, %v474
      %v476 = vpop.f32.mrf.mxu0
      %v477 = vadd.f32 %v294, %v476
      %478 = vmatprep.mubr.bf16.mxu0 0
      %479 = vmatmul.mubr.bf16.gmra.mxu0 %v357
      %v480 = vpop.f32.mrf.mxu0
      %v481 = vadd.f32 %v290, %v480
      %v482 = vpop.f32.mrf.mxu0
      %v483 = vadd.f32 %v294, %v482
      %v484 = vpop.f32.mrf.mxu0
      %v485 = vadd.f32 %v290, %v484
      %v486 = vpop.f32.mrf.mxu0
      %v487 = vadd.f32 %v294, %v486
      %488 = vmatprep.mubr.bf16.mxu0 0
      %489 = vmatmul.mubr.bf16.gmra.mxu0 %v360
      %v490 = vpop.f32.mrf.mxu0
      %v491 = vadd.f32 %v290, %v490
      %v492 = vpop.f32.mrf.mxu0
      %v493 = vadd.f32 %v294, %v492
      %v494 = vpop.f32.mrf.mxu0
      %v495 = vadd.f32 %v290, %v494
      %v496 = vpop.f32.mrf.mxu0
      %v497 = vadd.f32 %v294, %v496
      %498 = vmatprep.mubr.bf16.mxu0 0
      %499 = vmatmul.mubr.bf16.gmra.mxu0 %v363
      %v500 = vpop.f32.mrf.mxu0
      %v501 = vadd.f32 %v290, %v500
      %v502 = vpop.f32.mrf.mxu0
      %v503 = vadd.f32 %v294, %v502
      %v504 = vpop.f32.mrf.mxu0
      %v505 = vadd.f32 %v290, %v504
      %v506 = vpop.f32.mrf.mxu0
      %v507 = vadd.f32 %v294, %v506
      %508 = vmatprep.mubr.bf16.mxu0 0
      %509 = vmatmul.mubr.bf16.gmra.mxu0 %v366
      %v510 = vpop.f32.mrf.mxu0
      %v511 = vadd.f32 %v290, %v510
      %v512 = vpop.f32.mrf.mxu0
      %v513 = vadd.f32 %v294, %v512
      %v514 = vpop.f32.mrf.mxu0
      %v515 = vadd.f32 %v290, %v514
      %v516 = vpop.f32.mrf.mxu0
      %v517 = vadd.f32 %v294, %v516
      %518 = vmatprep.mubr.bf16.mxu0 0
      %519 = vmatmul.mubr.bf16.gmra.mxu0 %v369
      %v520 = vpop.f32.mrf.mxu0
      %v521 = vadd.f32 %v290, %v520
      %v522 = vpop.f32.mrf.mxu0
      %v523 = vadd.f32 %v294, %v522
      %v524 = vpop.f32.mrf.mxu0
      %v525 = vadd.f32 %v290, %v524
      %v526 = vpop.f32.mrf.mxu0
      %v527 = vadd.f32 %v294, %v526
      %528 = vmatprep.mubr.bf16.mxu0 0
      %529 = vmatmul.mubr.bf16.gmra.mxu0 %v372
      %v530 = vpop.f32.mrf.mxu0
      %v531 = vadd.f32 %v290, %v530
      %v532 = vpop.f32.mrf.mxu0
      %v533 = vadd.f32 %v294, %v532
      %v534 = vpop.f32.mrf.mxu0
      %v535 = vadd.f32 %v290, %v534
      %v536 = vpop.f32.mrf.mxu0
      %v537 = vadd.f32 %v294, %v536
      %538 = vmatprep.mubr.bf16.mxu0 0
      %539 = vmatmul.mubr.bf16.gmra.mxu0 %v375
      %v540 = vpop.f32.mrf.mxu0
      %v541 = vadd.f32 %v290, %v540
      %v542 = vpop.f32.mrf.mxu0
      %v543 = vadd.f32 %v294, %v542
      %v544 = vpop.f32.mrf.mxu0
      %v545 = vadd.f32 %v290, %v544
      %v546 = vpop.f32.mrf.mxu0
      %v547 = vadd.f32 %v294, %v546
      %548 = vmatprep.mubr.bf16.mxu0 0
      %549 = vmatmul.mubr.bf16.gmra.mxu0 %v378
      %v550 = vpop.f32.mrf.mxu0
      %v551 = vadd.f32 %v290, %v550
      %v552 = vpop.f32.mrf.mxu0
      %v553 = vadd.f32 %v294, %v552
      %v554 = vpop.f32.mrf.mxu0
      %v555 = vadd.f32 %v290, %v554
      %v556 = vpop.f32.mrf.mxu0
      %v557 = vadd.f32 %v294, %v556
      %558 = vmatprep.mubr.bf16.mxu0 0
      %559 = vmatmul.mubr.bf16.gmra.mxu0 %v381
      %v560 = vpop.f32.mrf.mxu0
      %v561 = vadd.f32 %v290, %v560
      %v562 = vpop.f32.mrf.mxu0
      %v563 = vadd.f32 %v294, %v562
      %v564 = vpop.f32.mrf.mxu0
      %v565 = vadd.f32 %v290, %v564
      %v566 = vpop.f32.mrf.mxu0
      %v567 = vadd.f32 %v294, %v566
      %568 = vmatprep.mubr.bf16.mxu0 0
      %569 = vmatmul.mubr.bf16.gmra.mxu0 %v384
      %v570 = vpop.f32.mrf.mxu0
      %v571 = vadd.f32 %v290, %v570
      %v572 = vpop.f32.mrf.mxu0
      %v573 = vadd.f32 %v294, %v572
      %v574 = vpop.f32.mrf.mxu0
      %v575 = vadd.f32 %v290, %v574
      %v576 = vpop.f32.mrf.mxu0
      %v577 = vadd.f32 %v294, %v576
      %578 = vdwg.mxu0
      %v579 = vmax.f32 %v421, 0.0
      %v580 = vmax.f32 %v423, 0.0
      %v581 = vmax.f32 %v425, 0.0
      %v582 = vmax.f32 %v427, 0.0
      %v583 = vmax.f32 %v431, 0.0
      %v584 = vmax.f32 %v433, 0.0
      %v585 = vmax.f32 %v435, 0.0
      %v586 = vmax.f32 %v437, 0.0
      %v587 = vmax.f32 %v441, 0.0
      %v588 = vmax.f32 %v443, 0.0
      %v589 = vmax.f32 %v445, 0.0
      %v590 = vmax.f32 %v447, 0.0
      %v591 = vmax.f32 %v451, 0.0
      %v592 = vmax.f32 %v453, 0.0
      %v593 = vmax.f32 %v455, 0.0
      %v594 = vmax.f32 %v457, 0.0
      %v595 = vmax.f32 %v461, 0.0
      %v596 = vmax.f32 %v463, 0.0
      %v597 = vmax.f32 %v465, 0.0
      %v598 = vmax.f32 %v467, 0.0
      %v599 = vmax.f32 %v471, 0.0
      %v600 = vmax.f32 %v473, 0.0
      %v601 = vmax.f32 %v475, 0.0
      %v602 = vmax.f32 %v477, 0.0
      %v603 = vmax.f32 %v481, 0.0
      %v604 = vmax.f32 %v483, 0.0
      %v605 = vmax.f32 %v485, 0.0
      %v606 = vmax.f32 %v487, 0.0
      %v607 = vmax.f32 %v491, 0.0
      %v608 = vmax.f32 %v493, 0.0
      %v609 = vmax.f32 %v495, 0.0
      %v610 = vmax.f32 %v497, 0.0
      %v611 = vmax.f32 %v501, 0.0
      %v612 = vmax.f32 %v503, 0.0
      %v613 = vmax.f32 %v505, 0.0
      %v614 = vmax.f32 %v507, 0.0
      %v615 = vmax.f32 %v511, 0.0
      %v616 = vmax.f32 %v513, 0.0
      %v617 = vmax.f32 %v515, 0.0
      %v618 = vmax.f32 %v517, 0.0
      %v619 = vmax.f32 %v521, 0.0
      %v620 = vmax.f32 %v523, 0.0
      %v621 = vmax.f32 %v525, 0.0
      %v622 = vmax.f32 %v527, 0.0
      %v623 = vmax.f32 %v531, 0.0
      %v624 = vmax.f32 %v533, 0.0
      %v625 = vmax.f32 %v535, 0.0
      %v626 = vmax.f32 %v537, 0.0
      %v627 = vmax.f32 %v541, 0.0
      %v628 = vmax.f32 %v543, 0.0
      %v629 = vmax.f32 %v545, 0.0
      %v630 = vmax.f32 %v547, 0.0
      %v631 = vmax.f32 %v551, 0.0
      %v632 = vmax.f32 %v553, 0.0
      %v633 = vmax.f32 %v555, 0.0
      %v634 = vmax.f32 %v557, 0.0
      %v635 = vmax.f32 %v561, 0.0
      %v636 = vmax.f32 %v563, 0.0
      %v637 = vmax.f32 %v565, 0.0
      %v638 = vmax.f32 %v567, 0.0
      %v639 = vmax.f32 %v571, 0.0
      %v640 = vmax.f32 %v573, 0.0
      %v641 = vmax.f32 %v575, 0.0
      %v642 = vmax.f32 %v577, 0.0
      %v643 = vpack.c.bf16 %v581, %v579
      %v644 = vpack.c.bf16 %v582, %v580
      %v645 = vpack.c.bf16 %v585, %v583
      %v646 = vpack.c.bf16 %v586, %v584
      %v647 = vpack.c.bf16 %v589, %v587
      %v648 = vpack.c.bf16 %v590, %v588
      %v649 = vpack.c.bf16 %v593, %v591
      %v650 = vpack.c.bf16 %v594, %v592
      %v651 = vpack.c.bf16 %v597, %v595
      %v652 = vpack.c.bf16 %v598, %v596
      %v653 = vpack.c.bf16 %v601, %v599
      %v654 = vpack.c.bf16 %v602, %v600
      %v655 = vpack.c.bf16 %v605, %v603
      %v656 = vpack.c.bf16 %v606, %v604
      %v657 = vpack.c.bf16 %v609, %v607
      %v658 = vpack.c.bf16 %v610, %v608
      %v659 = vpack.c.bf16 %v613, %v611
      %v660 = vpack.c.bf16 %v614, %v612
      %v661 = vpack.c.bf16 %v617, %v615
      %v662 = vpack.c.bf16 %v618, %v616
      %v663 = vpack.c.bf16 %v621, %v619
      %v664 = vpack.c.bf16 %v622, %v620
      %v665 = vpack.c.bf16 %v625, %v623
      %v666 = vpack.c.bf16 %v626, %v624
      %v667 = vpack.c.bf16 %v629, %v627
      %v668 = vpack.c.bf16 %v630, %v628
      %v669 = vpack.c.bf16 %v633, %v631
      %v670 = vpack.c.bf16 %v634, %v632
      %v671 = vpack.c.bf16 %v637, %v635
      %v672 = vpack.c.bf16 %v638, %v636
      %v673 = vpack.c.bf16 %v641, %v639
      %v674 = vpack.c.bf16 %v642, %v640
      %v675 = vld [vmem:[%s3] sm:$0xf]
      %v676 = vld [vmem:[%s3 + $0x4] sm:$0xf]
      %v677 = vld [vmem:[%s3 + $0x8] sm:$0xf]
      %v678 = vld [vmem:[%s3 + $0xc] sm:$0xf]
      %v679 = vld [vmem:[%s3 + $0x10] sm:$0xf]
      %v680 = vld [vmem:[%s3 + $0x14] sm:$0xf]
      %v681 = vld [vmem:[%s3 + $0x18] sm:$0xf]
      %v682 = vld [vmem:[%s3 + $0x1c] sm:$0xf]
      %v683 = vld [vmem:[%s3 + $0x20] sm:$0xf]
      %v684 = vld [vmem:[%s3 + $0x24] sm:$0xf]
      %v685 = vld [vmem:[%s3 + $0x28] sm:$0xf]
      %v686 = vld [vmem:[%s3 + $0x2c] sm:$0xf]
      %v687 = vld [vmem:[%s3 + $0x30] sm:$0xf]
      %v688 = vld [vmem:[%s3 + $0x34] sm:$0xf]
      %v689 = vld [vmem:[%s3 + $0x38] sm:$0xf]
      %v690 = vld [vmem:[%s3 + $0x3c] sm:$0xf]
      %v691 = vld [vmem:[%s3 + $0x40] sm:$0xf]
      %v692 = vld [vmem:[%s3 + $0x44] sm:$0xf]
      %v693 = vld [vmem:[%s3 + $0x48] sm:$0xf]
      %v694 = vld [vmem:[%s3 + $0x4c] sm:$0xf]
      %v695 = vld [vmem:[%s3 + $0x50] sm:$0xf]
      %v696 = vld [vmem:[%s3 + $0x54] sm:$0xf]
      %v697 = vld [vmem:[%s3 + $0x58] sm:$0xf]
      %v698 = vld [vmem:[%s3 + $0x5c] sm:$0xf]
      %v699 = vld [vmem:[%s3 + $0x60] sm:$0xf]
      %v700 = vld [vmem:[%s3 + $0x64] sm:$0xf]
      %v701 = vld [vmem:[%s3 + $0x68] sm:$0xf]
      %v702 = vld [vmem:[%s3 + $0x6c] sm:$0xf]
      %v703 = vld [vmem:[%s3 + $0x70] sm:$0xf]
      %v704 = vld [vmem:[%s3 + $0x74] sm:$0xf]
      %v705 = vld [vmem:[%s3 + $0x78] sm:$0xf]
      %v706 = vld [vmem:[%s3 + $0x7c] sm:$0xf]
      %v707 = vld [vmem:[%s4] sm:$0x1]
      %v709 = vlaneseq
      %v710 = vshrl.u32 %v709, 7
      %v711 = vsub.s32 0, %v710
      %v712 = vrot.slane %v707, %v711
      %v746 = vunpack.c.l.b16 %v675
      %v747 = vunpack.c.l.b16 %v676
      %v748 = vunpack.c.l.b16 %v677
      %v749 = vunpack.c.l.b16 %v678
      %v750 = vunpack.c.l.b16 %v679
      %v751 = vunpack.c.l.b16 %v680
      %v752 = vunpack.c.l.b16 %v681
      %v753 = vunpack.c.l.b16 %v682
      %v754 = vunpack.c.l.b16 %v683
      %v755 = vunpack.c.l.b16 %v684
      %v756 = vunpack.c.l.b16 %v685
      %v757 = vunpack.c.l.b16 %v686
      %v758 = vunpack.c.l.b16 %v687
      %v759 = vunpack.c.l.b16 %v688
      %v760 = vunpack.c.l.b16 %v689
      %v761 = vunpack.c.l.b16 %v690
      %v762 = vunpack.c.l.b16 %v691
      %v763 = vunpack.c.l.b16 %v692
      %v764 = vunpack.c.l.b16 %v693
      %v765 = vunpack.c.l.b16 %v694
      %v766 = vunpack.c.l.b16 %v695
      %v767 = vunpack.c.l.b16 %v696
      %v768 = vunpack.c.l.b16 %v697
      %v769 = vunpack.c.l.b16 %v698
      %v770 = vunpack.c.l.b16 %v699
      %v771 = vunpack.c.l.b16 %v700
      %v772 = vunpack.c.l.b16 %v701
      %v773 = vunpack.c.l.b16 %v702
      %v774 = vunpack.c.l.b16 %v703
      %v775 = vunpack.c.l.b16 %v704
      %v776 = vunpack.c.l.b16 %v705
      %v777 = vunpack.c.l.b16 %v706
      %v778 = vpack.c.b16 %v747, %v746
      %v779 = vpack.c.b16 %v749, %v748
      %v780 = vpack.c.b16 %v751, %v750
      %v781 = vpack.c.b16 %v753, %v752
      %v782 = vpack.c.b16 %v755, %v754
      %v783 = vpack.c.b16 %v757, %v756
      %v784 = vpack.c.b16 %v759, %v758
      %v785 = vpack.c.b16 %v761, %v760
      %v786 = vpack.c.b16 %v763, %v762
      %v787 = vpack.c.b16 %v765, %v764
      %v788 = vpack.c.b16 %v767, %v766
      %v789 = vpack.c.b16 %v769, %v768
      %v790 = vpack.c.b16 %v771, %v770
      %v791 = vpack.c.b16 %v773, %v772
      %v792 = vpack.c.b16 %v775, %v774
      %v793 = vpack.c.b16 %v777, %v776
      %810 = vmatprep.subr.bf16.mxu0 0
      %811 = vmatpush1.bf16.msra.mxu0 %v785
      %812 = vmatprep.subr.bf16.mxu0 0
      %813 = vmatpush1.bf16.msra.mxu0 %v784
      %814 = vmatprep.subr.bf16.mxu0 0
      %815 = vmatpush1.bf16.msra.mxu0 %v783
      %816 = vmatprep.subr.bf16.mxu0 0
      %817 = vmatpush1.bf16.msra.mxu0 %v782
      %818 = vmatprep.subr.bf16.mxu0 0
      %819 = vmatpush1.bf16.msra.mxu0 %v781
      %820 = vmatprep.subr.bf16.mxu0 0
      %821 = vmatpush1.bf16.msra.mxu0 %v780
      %822 = vmatprep.subr.bf16.mxu0 0
      %823 = vmatpush1.bf16.msra.mxu0 %v779
      %824 = vmatprep.subr.bf16.mxu0 0
      %825 = vmatpush1.bf16.msra.mxu0 %v778
      %826 = vmatprep.subr.bf16.mxu0 0
      %827 = vmatpush2.bf16.msra.mxu0 %v793
      %828 = vmatprep.subr.bf16.mxu0 0
      %829 = vmatpush2.bf16.msra.mxu0 %v792
      %830 = vmatprep.subr.bf16.mxu0 0
      %831 = vmatpush2.bf16.msra.mxu0 %v791
      %832 = vmatprep.subr.bf16.mxu0 0
      %833 = vmatpush2.bf16.msra.mxu0 %v790
      %834 = vmatprep.subr.bf16.mxu0 0
      %835 = vmatpush2.bf16.msra.mxu0 %v789
      %836 = vmatprep.subr.bf16.mxu0 0
      %837 = vmatpush2.bf16.msra.mxu0 %v788
      %838 = vmatprep.subr.bf16.mxu0 0
      %839 = vmatpush2.bf16.msra.mxu0 %v787
      %840 = vmatprep.subr.bf16.mxu0 0
      %841 = vmatpush2.bf16.msra.mxu0 %v786
      %842 = vmatprep.mubr.bf16.mxu0 %v644
      %843 = vmatmul.mubr.bf16.gmra.mxu0 %v643
      %v844 = vpop.f32.mrf.mxu0
      %v845 = vadd.f32 %v712, %v844
      %v846 = vpop.f32.mrf.mxu0
      %v847 = vpop.f32.mrf.mxu0
      %v848 = vadd.f32 %v712, %v847
      %v849 = vpop.f32.mrf.mxu0
      %850 = vmatprep.mubr.bf16.mxu0 %v646
      %851 = vmatmul.mubr.bf16.gmra.mxu0 %v645
      %v852 = vpop.f32.mrf.mxu0
      %v853 = vadd.f32 %v712, %v852
      %v854 = vpop.f32.mrf.mxu0
      %v855 = vpop.f32.mrf.mxu0
      %v856 = vadd.f32 %v712, %v855
      %v857 = vpop.f32.mrf.mxu0
      %858 = vmatprep.mubr.bf16.mxu0 %v648
      %859 = vmatmul.mubr.bf16.gmra.mxu0 %v647
      %v860 = vpop.f32.mrf.mxu0
      %v861 = vadd.f32 %v712, %v860
      %v862 = vpop.f32.mrf.mxu0
      %v863 = vpop.f32.mrf.mxu0
      %v864 = vadd.f32 %v712, %v863
      %v865 = vpop.f32.mrf.mxu0
      %866 = vmatprep.mubr.bf16.mxu0 %v650
      %867 = vmatmul.mubr.bf16.gmra.mxu0 %v649
      %v868 = vpop.f32.mrf.mxu0
      %v869 = vadd.f32 %v712, %v868
      %v870 = vpop.f32.mrf.mxu0
      %v871 = vpop.f32.mrf.mxu0
      %v872 = vadd.f32 %v712, %v871
      %v873 = vpop.f32.mrf.mxu0
      %874 = vmatprep.mubr.bf16.mxu0 %v652
      %875 = vmatmul.mubr.bf16.gmra.mxu0 %v651
      %v876 = vpop.f32.mrf.mxu0
      %v877 = vadd.f32 %v712, %v876
      %v878 = vpop.f32.mrf.mxu0
      %v879 = vpop.f32.mrf.mxu0
      %v880 = vadd.f32 %v712, %v879
      %v881 = vpop.f32.mrf.mxu0
      %882 = vmatprep.mubr.bf16.mxu0 %v654
      %883 = vmatmul.mubr.bf16.gmra.mxu0 %v653
      %v884 = vpop.f32.mrf.mxu0
      %v885 = vadd.f32 %v712, %v884
      %v886 = vpop.f32.mrf.mxu0
      %v887 = vpop.f32.mrf.mxu0
      %v888 = vadd.f32 %v712, %v887
      %v889 = vpop.f32.mrf.mxu0
      %890 = vmatprep.mubr.bf16.mxu0 %v656
      %891 = vmatmul.mubr.bf16.gmra.mxu0 %v655
      %v892 = vpop.f32.mrf.mxu0
      %v893 = vadd.f32 %v712, %v892
      %v894 = vpop.f32.mrf.mxu0
      %v895 = vpop.f32.mrf.mxu0
      %v896 = vadd.f32 %v712, %v895
      %v897 = vpop.f32.mrf.mxu0
      %898 = vmatprep.mubr.bf16.mxu0 %v658
      %899 = vmatmul.mubr.bf16.gmra.mxu0 %v657
      %v900 = vpop.f32.mrf.mxu0
      %v901 = vadd.f32 %v712, %v900
      %v902 = vpop.f32.mrf.mxu0
      %v903 = vpop.f32.mrf.mxu0
      %v904 = vadd.f32 %v712, %v903
      %v905 = vpop.f32.mrf.mxu0
      %906 = vmatprep.mubr.bf16.mxu0 %v660
      %907 = vmatmul.mubr.bf16.gmra.mxu0 %v659
      %v908 = vpop.f32.mrf.mxu0
      %v909 = vadd.f32 %v712, %v908
      %v910 = vpop.f32.mrf.mxu0
      %v911 = vpop.f32.mrf.mxu0
      %v912 = vadd.f32 %v712, %v911
      %v913 = vpop.f32.mrf.mxu0
      %914 = vmatprep.mubr.bf16.mxu0 %v662
      %915 = vmatmul.mubr.bf16.gmra.mxu0 %v661
      %v916 = vpop.f32.mrf.mxu0
      %v917 = vadd.f32 %v712, %v916
      %v918 = vpop.f32.mrf.mxu0
      %v919 = vpop.f32.mrf.mxu0
      %v920 = vadd.f32 %v712, %v919
      %v921 = vpop.f32.mrf.mxu0
      %922 = vmatprep.mubr.bf16.mxu0 %v664
      %923 = vmatmul.mubr.bf16.gmra.mxu0 %v663
      %v924 = vpop.f32.mrf.mxu0
      %v925 = vadd.f32 %v712, %v924
      %v926 = vpop.f32.mrf.mxu0
      %v927 = vpop.f32.mrf.mxu0
      %v928 = vadd.f32 %v712, %v927
      %v929 = vpop.f32.mrf.mxu0
      %930 = vmatprep.mubr.bf16.mxu0 %v666
      %931 = vmatmul.mubr.bf16.gmra.mxu0 %v665
      %v932 = vpop.f32.mrf.mxu0
      %v933 = vadd.f32 %v712, %v932
      %v934 = vpop.f32.mrf.mxu0
      %v935 = vpop.f32.mrf.mxu0
      %v936 = vadd.f32 %v712, %v935
      %v937 = vpop.f32.mrf.mxu0
      %938 = vmatprep.mubr.bf16.mxu0 %v668
      %939 = vmatmul.mubr.bf16.gmra.mxu0 %v667
      %v940 = vpop.f32.mrf.mxu0
      %v941 = vadd.f32 %v712, %v940
      %v942 = vpop.f32.mrf.mxu0
      %v943 = vpop.f32.mrf.mxu0
      %v944 = vadd.f32 %v712, %v943
      %v945 = vpop.f32.mrf.mxu0
      %946 = vmatprep.mubr.bf16.mxu0 %v670
      %947 = vmatmul.mubr.bf16.gmra.mxu0 %v669
      %v948 = vpop.f32.mrf.mxu0
      %v949 = vadd.f32 %v712, %v948
      %v950 = vpop.f32.mrf.mxu0
      %v951 = vpop.f32.mrf.mxu0
      %v952 = vadd.f32 %v712, %v951
      %v953 = vpop.f32.mrf.mxu0
      %954 = vmatprep.mubr.bf16.mxu0 %v672
      %955 = vmatmul.mubr.bf16.gmra.mxu0 %v671
      %v956 = vpop.f32.mrf.mxu0
      %v957 = vadd.f32 %v712, %v956
      %v958 = vpop.f32.mrf.mxu0
      %v959 = vpop.f32.mrf.mxu0
      %v960 = vadd.f32 %v712, %v959
      %v961 = vpop.f32.mrf.mxu0
      %962 = vmatprep.mubr.bf16.mxu0 %v674
      %963 = vmatmul.mubr.bf16.gmra.mxu0 %v673
      %v964 = vpop.f32.mrf.mxu0
      %v965 = vadd.f32 %v712, %v964
      %v966 = vpop.f32.mrf.mxu0
      %v967 = vpop.f32.mrf.mxu0
      %v968 = vadd.f32 %v712, %v967
      %v969 = vpop.f32.mrf.mxu0
      %970 = vdwg.mxu0
      %vm971 = vcmask 261120
      %972 = vst.msk [vmem:[%s226] sm:$0xff] %vm971, %v845
      %973 = vst.msk [vmem:[%s226 + $0x8] sm:$0xff] %vm971, %v848
      %974 = vst.msk [vmem:[%s226 + $0x10] sm:$0xff] %vm971, %v853
      %975 = vst.msk [vmem:[%s226 + $0x18] sm:$0xff] %vm971, %v856
      %976 = vst.msk [vmem:[%s226 + $0x20] sm:$0xff] %vm971, %v861
      %977 = vst.msk [vmem:[%s226 + $0x28] sm:$0xff] %vm971, %v864
      %978 = vst.msk [vmem:[%s226 + $0x30] sm:$0xff] %vm971, %v869
      %979 = vst.msk [vmem:[%s226 + $0x38] sm:$0xff] %vm971, %v872
      %980 = vst.msk [vmem:[%s226 + $0x40] sm:$0xff] %vm971, %v877
      %981 = vst.msk [vmem:[%s226 + $0x48] sm:$0xff] %vm971, %v880
      %982 = vst.msk [vmem:[%s226 + $0x50] sm:$0xff] %vm971, %v885
      %983 = vst.msk [vmem:[%s226 + $0x58] sm:$0xff] %vm971, %v888
      %984 = vst.msk [vmem:[%s226 + $0x60] sm:$0xff] %vm971, %v893
      %985 = vst.msk [vmem:[%s226 + $0x68] sm:$0xff] %vm971, %v896
      %986 = vst.msk [vmem:[%s226 + $0x70] sm:$0xff] %vm971, %v901
      %987 = vst.msk [vmem:[%s226 + $0x78] sm:$0xff] %vm971, %v904
      %988 = vst.msk [vmem:[%s226 + $0x80] sm:$0xff] %vm971, %v909
      %989 = vst.msk [vmem:[%s226 + $0x88] sm:$0xff] %vm971, %v912
      %990 = vst.msk [vmem:[%s226 + $0x90] sm:$0xff] %vm971, %v917
      %991 = vst.msk [vmem:[%s226 + $0x98] sm:$0xff] %vm971, %v920
      %992 = vst.msk [vmem:[%s226 + $0xa0] sm:$0xff] %vm971, %v925
      %993 = vst.msk [vmem:[%s226 + $0xa8] sm:$0xff] %vm971, %v928
      %994 = vst.msk [vmem:[%s226 + $0xb0] sm:$0xff] %vm971, %v933
      %995 = vst.msk [vmem:[%s226 + $0xb8] sm:$0xff] %vm971, %v936
      %996 = vst.msk [vmem:[%s226 + $0xc0] sm:$0xff] %vm971, %v941
      %997 = vst.msk [vmem:[%s226 + $0xc8] sm:$0xff] %vm971, %v944
      %998 = vst.msk [vmem:[%s226 + $0xd0] sm:$0xff] %vm971, %v949
      %999 = vst.msk [vmem:[%s226 + $0xd8] sm:$0xff] %vm971, %v952
      %1000 = vst.msk [vmem:[%s226 + $0xe0] sm:$0xff] %vm971, %v957
      %1001 = vst.msk [vmem:[%s226 + $0xe8] sm:$0xff] %vm971, %v960
      %1002 = vst.msk [vmem:[%s226 + $0xf0] sm:$0xff] %vm971, %v965
      %1003 = vst.msk [vmem:[%s226 + $0xf8] sm:$0xff] %vm971, %v968
      %s1004 = smul.u32 32, %s16
      %p1005 = scmp.lt.s32.totalorder %s1004, 63
      %s1006 = scalar_select %p1005, %s1004, 63
      %s1007 = smul.addr %s1006, 8
      %s1008 = scalar_lea.vmem %s5, %s1007
      // Predicated region
      $region41: #{two_layer_net.1} parent=39 // pred_check
        %p1009 = pneg %p144
      $region42: #{two_layer_net.1} parent=39 // pred_check_branch
        %1011 = sbr.rel (%p1009) target = $region44
      $region43: #{two_layer_net.1} parent=39 // pred_region
        %s1012 = smul.u32 32, %s16
      $region44: #{two_layer_net.1} parent=39 // pred_fallthru
        _
    $region40: #{two_layer_net.1} parent=5 // pred_fallthru
      _
    %p1013 = scmp.le.s32.totalorder 2, %s11
    // Predicated region
    $region45: #{two_layer_net.1} parent=5 // pred_check
      %p1014 = pneg %p1013
    $region46: #{two_layer_net.1} parent=5 // pred_check_branch
      %1016 = sbr.rel (%p1014) target = $region48
    $region47: #{two_layer_net.1} parent=5 // pred_region
      %s1017 = ssub.s32 %s11, 2
      // Predicated region
      $region49: #{two_layer_net.1} parent=47 // pred_check
        %p1018 = pneg %p150
      $region50: #{two_layer_net.1} parent=47 // pred_check_branch
        %1020 = sbr.rel (%p1018) target = $region52
      $region51: #{two_layer_net.1} parent=47 // pred_region
        %s1021 = smul.u32 32, %s17
        %p1022 = scmp.lt.s32.totalorder %s1021, 63
        %s1023 = scalar_select %p1022, %s1021, 63
        %s1024 = smul.addr %s1023, 8
        %s1025 = scalar_lea.vmem %s5, %s1024
      $region52: #{two_layer_net.1} parent=47 // pred_fallthru
        _
    $region48: #{two_layer_net.1} parent=5 // pred_fallthru
      _
  $region6: #{two_layer_net.1} parent=0 // loop_footer
    %s15 = sadd.s32 1, %s11
  $region7: #{two_layer_net.1} parent=0 // loop_footer_branch
    %10 = sbr.rel target = $region3
  $region8: #{two_layer_net.1} parent=0 // loop_exit
    _

// kernel: two_layer_net.1
$region0: #{two_layer_net.1}
  #allocation0 [shape = 'u32[]', space=smem, size = 0x4, offset = 0x4, fixed_abs, tag = 'smem constant byte address 0x4 - core index']
  #allocation1 [shape = 'u32[144,128]{1,0:T(1,128)}', space=vmem, size = 0x12000, scoped, tag = 'internal scratch']
  %s0 = inlined_call_operand.vmem [shape: f32[512,64], index: 0, kind: input, shape index: {}]
  %s1 = inlined_call_operand.vmem [shape: bf16[64,256], index: 1, kind: input, shape index: {}]
  %s2 = inlined_call_operand.vmem [shape: f32[1,256], index: 2, kind: input, shape index: {}]
  %s3 = inlined_call_operand.vmem [shape: bf16[256,32], index: 3, kind: input, shape index: {}]
  %s4 = inlined_call_operand.vmem [shape: f32[1,32], index: 4, kind: input, shape index: {}]
  %s5 = inlined_call_operand.vmem [shape: f32[512,32], index: 5, kind: output, shape index: {}]
  %s6 = sld [smem:[#allocation0]]
  $region53: #{two_layer_net.1} parent=0
    _
  %s8 = ssub.s32 1, %s6
  %s9 = scalar_select 0, %s8, %s6
  loop: start=0, step=1, limit=4
  $region2: #{two_layer_net.1} parent=0 // loop_pre_header
    _
  $region3: #{two_layer_net.1} parent=0 // loop_header
    %s11 = sphi 0, %s15
    %p12 = scmp.ge.s32.totalorder %s11, 4
    %s21 = sphi 0, %s23
    %s24 = sphi 0, %s21
    %s25 = sphi 0, %s24
    %s41 = sphi 0, %s25
    %s45 = sphi 0, %s45
    %s47 = sphi 0, %s45
    %s48 = sphi 0, %s47
    %s62 = sphi 0, %s48
    %s66 = sphi 0, %s66
    %s68 = sphi 0, %s66
    %s69 = sphi 0, %s68
    %s83 = sphi 0, %s69
    %s87 = sphi 0, %s87
    %s89 = sphi 0, %s87
    %s90 = sphi 0, %s89
    %s104 = sphi 0, %s90
    %s108 = sphi 0, %s108
    %s110 = sphi 0, %s108
    %s111 = sphi 0, %s110
    %s125 = sphi 0, %s111
    %s131 = sphi 0, %s133
    %s134 = sphi 0, %s131
    %s135 = sphi 0, %s134
    %s151 = sphi 0, %s135
  $region4: #{two_layer_net.1} parent=0 // loop_header_branch
    %14 = sbr.rel (%p12) target = $region8
  $region5: #{two_layer_net.1} parent=0 // loop_body
    %s16 = ssub.s32 %s11, 1
    %s17 = ssub.s32 %s11, 2
    %s18 = sadd.s32 %s11, 1
    %s19 = ssub.s32 %s11, %s18
    %p20 = scmp.eq.s32.totalorder %s19, 0
    %s22 = sadd.s32 %s21, 1
    %s23 = scalar_select %p20, %s21, %s22
    %p26 = pneg %p20
    %p27 = scmp.eq.s32.totalorder %s11, 1
    %p28 = por %p26, %p27
    %p29 = scmp.ne.s32.totalorder %s21, %s24
    %p30 = scmp.eq.s32.totalorder %s11, 0
    %p31 = por %p29, %p30
    %p32 = scmp.ne.s32.totalorder %s21, %s24
    %p33 = scmp.eq.s32.totalorder %s16, 1
    %p34 = por %p32, %p33
    %p35 = scmp.ne.s32.totalorder %s24, %s25
    %p36 = scmp.eq.s32.totalorder %s16, 0
    %p37 = por %p35, %p36
    %p38 = scmp.ne.s32.totalorder %s24, %s25
    %p39 = scmp.eq.s32.totalorder %s17, 1
    %p40 = por %p38, %p39
    %p42 = scmp.ne.s32.totalorder %s25, %s41
    %p43 = scmp.eq.s32.totalorder %s17, 0
    %p44 = por %p42, %p43
    %s46 = sadd.s32 %s45, 1
    %p49 = scmp.eq.s32.totalorder %s11, 1
    %p50 = scmp.ne.s32.totalorder %s45, %s47
    %p51 = scmp.eq.s32.totalorder %s11, 0
    %p52 = por %p50, %p51
    %p53 = scmp.ne.s32.totalorder %s45, %s47
    %p54 = scmp.eq.s32.totalorder %s16, 1
    %p55 = por %p53, %p54
    %p56 = scmp.ne.s32.totalorder %s47, %s48
    %p57 = scmp.eq.s32.totalorder %s16, 0
    %p58 = por %p56, %p57
    %p59 = scmp.ne.s32.totalorder %s47, %s48
    %p60 = scmp.eq.s32.totalorder %s17, 1
    %p61 = por %p59, %p60
    %p63 = scmp.ne.s32.totalorder %s48, %s62
    %p64 = scmp.eq.s32.totalorder %s17, 0
    %p65 = por %p63, %p64
    %s67 = sadd.s32 %s66, 1
    %p70 = scmp.eq.s32.totalorder %s11, 1
    %p71 = scmp.ne.s32.totalorder %s66, %s68
    %p72 = scmp.eq.s32.totalorder %s11, 0
    %p73 = por %p71, %p72
    %p74 = scmp.ne.s32.totalorder %s66, %s68
    %p75 = scmp.eq.s32.totalorder %s16, 1
    %p76 = por %p74, %p75
    %p77 = scmp.ne.s32.totalorder %s68, %s69
    %p78 = scmp.eq.s32.totalorder %s16, 0
    %p79 = por %p77, %p78
    %p80 = scmp.ne.s32.totalorder %s68, %s69
    %p81 = scmp.eq.s32.totalorder %s17, 1
    %p82 = por %p80, %p81
    %p84 = scmp.ne.s32.totalorder %s69, %s83
    %p85 = scmp.eq.s32.totalorder %s17, 0
    %p86 = por %p84, %p85
    %s88 = sadd.s32 %s87, 1
    %p91 = scmp.eq.s32.totalorder %s11, 1
    %p92 = scmp.ne.s32.totalorder %s87, %s89
    %p93 = scmp.eq.s32.totalorder %s11, 0
    %p94 = por %p92, %p93
    %p95 = scmp.ne.s32.totalorder %s87, %s89
    %p96 = scmp.eq.s32.totalorder %s16, 1
    %p97 = por %p95, %p96
    %p98 = scmp.ne.s32.totalorder %s89, %s90
    %p99 = scmp.eq.s32.totalorder %s16, 0
    %p100 = por %p98, %p99
    %p101 = scmp.ne.s32.totalorder %s89, %s90
    %p102 = scmp.eq.s32.totalorder %s17, 1
    %p103 = por %p101, %p102
    %p105 = scmp.ne.s32.totalorder %s90, %s104
    %p106 = scmp.eq.s32.totalorder %s17, 0
    %p107 = por %p105, %p106
    %s109 = sadd.s32 %s108, 1
    %p112 = scmp.eq.s32.totalorder %s11, 1
    %p113 = scmp.ne.s32.totalorder %s108, %s110
    %p114 = scmp.eq.s32.totalorder %s11, 0
    %p115 = por %p113, %p114
    %p116 = scmp.ne.s32.totalorder %s108, %s110
    %p117 = scmp.eq.s32.totalorder %s16, 1
    %p118 = por %p116, %p117
    %p119 = scmp.ne.s32.totalorder %s110, %s111
    %p120 = scmp.eq.s32.totalorder %s16, 0
    %p121 = por %p119, %p120
    %p122 = scmp.ne.s32.totalorder %s110, %s111
    %p123 = scmp.eq.s32.totalorder %s17, 1
    %p124 = por %p122, %p123
    %p126 = scmp.ne.s32.totalorder %s111, %s125
    %p127 = scmp.eq.s32.totalorder %s17, 0
    %p128 = por %p126, %p127
    %s129 = ssub.s32 %s11, %s18
    %p130 = scmp.eq.s32.totalorder %s129, 0
    %s132 = sadd.s32 %s131, 1
    %s133 = scalar_select %p130, %s131, %s132
    %p136 = pneg %p130
    %p137 = scmp.eq.s32.totalorder %s11, 1
    %p138 = por %p136, %p137
    %p139 = scmp.ne.s32.totalorder %s131, %s134
    %p140 = scmp.eq.s32.totalorder %s11, 0
    %p141 = por %p139, %p140
    %p142 = scmp.ne.s32.totalorder %s131, %s134
    %p143 = scmp.eq.s32.totalorder %s16, 1
    %p144 = por %p142, %p143
    %p145 = scmp.ne.s32.totalorder %s134, %s135
    %p146 = scmp.eq.s32.totalorder %s16, 0
    %p147 = por %p145, %p146
    %p148 = scmp.ne.s32.totalorder %s134, %s135
    %p149 = scmp.eq.s32.totalorder %s17, 1
    %p150 = por %p148, %p149
    %p152 = scmp.ne.s32.totalorder %s135, %s151
    %p153 = scmp.eq.s32.totalorder %s17, 0
    %p154 = por %p152, %p153
    %p155 = scmp.le.s32.totalorder 1, %s11
    %p156 = scmp.lt.s32.totalorder %s11, 3
    %p157 = pnand %p155, %p156
    %p158 = pneg %p157
    // Predicated region
    $region9: #{two_layer_net.1} parent=5 // pred_check
      _
    $region10: #{two_layer_net.1} parent=5 // pred_check_branch
      %160 = sbr.rel (%p157) target = $region12
    $region11: #{two_layer_net.1} parent=5 // pred_region
      %s161 = ssub.s32 %s11, 1
      // Predicated region
      $region13: #{two_layer_net.1} parent=11 // pred_check
        %p162 = pneg %p58
      $region14: #{two_layer_net.1} parent=11 // pred_check_branch
        %164 = sbr.rel (%p162) target = $region16
      $region15: #{two_layer_net.1} parent=11 // pred_region
        _
      $region16: #{two_layer_net.1} parent=11 // pred_fallthru
        _
      // Predicated region
      $region17: #{two_layer_net.1} parent=11 // pred_check
        %p165 = pneg %p79
      $region18: #{two_layer_net.1} parent=11 // pred_check_branch
        %167 = sbr.rel (%p165) target = $region20
      $region19: #{two_layer_net.1} parent=11 // pred_region
        _
      $region20: #{two_layer_net.1} parent=11 // pred_fallthru
        _
      // Predicated region
      $region21: #{two_layer_net.1} parent=11 // pred_check
        %p168 = pneg %p100
      $region22: #{two_layer_net.1} parent=11 // pred_check_branch
        %170 = sbr.rel (%p168) target = $region24
      $region23: #{two_layer_net.1} parent=11 // pred_region
        _
      $region24: #{two_layer_net.1} parent=11 // pred_fallthru
        _
      // Predicated region
      $region25: #{two_layer_net.1} parent=11 // pred_check
        %p171 = pneg %p121
      $region26: #{two_layer_net.1} parent=11 // pred_check_branch
        %173 = sbr.rel (%p171) target = $region28
      $region27: #{two_layer_net.1} parent=11 // pred_region
        _
      $region28: #{two_layer_net.1} parent=11 // pred_fallthru
        _
    $region12: #{two_layer_net.1} parent=5 // pred_fallthru
      _
    %p174 = scmp.lt.s32.totalorder %s11, 2
    // Predicated region
    $region29: #{two_layer_net.1} parent=5 // pred_check
      %p175 = pneg %p174
    $region30: #{two_layer_net.1} parent=5 // pred_check_branch
      %177 = sbr.rel (%p175) target = $region32
    $region31: #{two_layer_net.1} parent=5 // pred_region
      // Predicated region
      $region33: #{two_layer_net.1} parent=31 // pred_check
        %p178 = pneg %p31
      $region34: #{two_layer_net.1} parent=31 // pred_check_branch
        %180 = sbr.rel (%p178) target = $region36
      $region35: #{two_layer_net.1} parent=31 // pred_region
        %s181 = smul.u32 32, %s11
        %p182 = scmp.lt.s32.totalorder %s181, 63
        %s183 = scalar_select %p182, %s181, 63
        %s184 = smul.addr %s183, 8
        %s185 = scalar_lea.vmem %s0, %s184
        %s186 = smul.u32 32, %s11
      $region36: #{two_layer_net.1} parent=31 // pred_fallthru
        _
    $region32: #{two_layer_net.1} parent=5 // pred_fallthru
      _
    %p187 = scmp.le.s32.totalorder 1, %s11
    %p188 = scmp.lt.s32.totalorder %s11, 3
    %p189 = pnand %p187, %p188
    %p190 = pneg %p189
    // Predicated region
    $region37: #{two_layer_net.1} parent=5 // pred_check
      _
    $region38: #{two_layer_net.1} parent=5 // pred_check_branch
      %192 = sbr.rel (%p189) target = $region40
    $region39: #{two_layer_net.1} parent=5 // pred_region
      %s193 = ssub.s32 %s11, 1
      %s194 = smul.u32 32, %s16
      %p195 = scmp.lt.s32.totalorder %s194, 63
      %s196 = scalar_select %p195, %s194, 63
      %s197 = smul.addr %s196, 8
      %s198 = scalar_lea.vmem %s0, %s197
      %p199 = pneg %p37
      %p200 = pneg %p34
      %p201 = pneg %p58
      %p202 = pneg %p55
      %p203 = pneg %p79
      %p204 = pneg %p76
      %p205 = pneg %p100
      %p206 = pneg %p97
      %p207 = pneg %p121
      %p208 = pneg %p118
      %p209 = pneg %p147
      %p210 = pneg %p144
      %s211 = smul.u32 32, %s16
      %p212 = scmp.lt.s32.totalorder %s211, 63
      %s213 = scalar_select %p212, %s211, 63
      %s214 = smul.addr %s213, 8
      %s215 = scalar_lea.vmem %s5, %s214
      %s216 = smul.u32 32, %s16
      %p217 = scmp.lt.s32.totalorder %s216, 63
      %s218 = scalar_select %p217, %s216, 63
      %s219 = smul.addr %s218, 8
      %s220 = scalar_lea.vmem %s0, %s219
      %s221 = smul.u32 32, %s16
      %s222 = smul.u32 32, %s16
      %p223 = scmp.lt.s32.totalorder %s222, 63
      %s224 = scalar_select %p223, %s222, 63
      %s225 = smul.addr %s224, 8
      %s226 = scalar_lea.vmem %s5, %s225
      %s227 = smul.u32 32, %s16
      %v229 = vld [vmem:[%s220] sm:$0xff]
      %v230 = vld [vmem:[%s220 + $0x8] sm:$0xff]
      %v231 = vld [vmem:[%s220 + $0x10] sm:$0xff]
      %v232 = vld [vmem:[%s220 + $0x18] sm:$0xff]
      %v233 = vld [vmem:[%s220 + $0x20] sm:$0xff]
      %v234 = vld [vmem:[%s220 + $0x28] sm:$0xff]
      %v235 = vld [vmem:[%s220 + $0x30] sm:$0xff]
      %v236 = vld [vmem:[%s220 + $0x38] sm:$0xff]
      %v237 = vld [vmem:[%s220 + $0x40] sm:$0xff]
      %v238 = vld [vmem:[%s220 + $0x48] sm:$0xff]
      %v239 = vld [vmem:[%s220 + $0x50] sm:$0xff]
      %v240 = vld [vmem:[%s220 + $0x58] sm:$0xff]
      %v241 = vld [vmem:[%s220 + $0x60] sm:$0xff]
      %v242 = vld [vmem:[%s220 + $0x68] sm:$0xff]
      %v243 = vld [vmem:[%s220 + $0x70] sm:$0xff]
      %v244 = vld [vmem:[%s220 + $0x78] sm:$0xff]
      %v245 = vld [vmem:[%s220 + $0x80] sm:$0xff]
      %v246 = vld [vmem:[%s220 + $0x88] sm:$0xff]
      %v247 = vld [vmem:[%s220 + $0x90] sm:$0xff]
      %v248 = vld [vmem:[%s220 + $0x98] sm:$0xff]
      %v249 = vld [vmem:[%s220 + $0xa0] sm:$0xff]
      %v250 = vld [vmem:[%s220 + $0xa8] sm:$0xff]
      %v251 = vld [vmem:[%s220 + $0xb0] sm:$0xff]
      %v252 = vld [vmem:[%s220 + $0xb8] sm:$0xff]
      %v253 = vld [vmem:[%s220 + $0xc0] sm:$0xff]
      %v254 = vld [vmem:[%s220 + $0xc8] sm:$0xff]
      %v255 = vld [vmem:[%s220 + $0xd0] sm:$0xff]
      %v256 = vld [vmem:[%s220 + $0xd8] sm:$0xff]
      %v257 = vld [vmem:[%s220 + $0xe0] sm:$0xff]
      %v258 = vld [vmem:[%s220 + $0xe8] sm:$0xff]
      %v259 = vld [vmem:[%s220 + $0xf0] sm:$0xff]
      %v260 = vld [vmem:[%s220 + $0xf8] sm:$0xff]
      %v261 = vpack.c.bf16 %v230, %v229
      %v262 = vpack.c.bf16 %v232, %v231
      %v263 = vpack.c.bf16 %v234, %v233
      %v264 = vpack.c.bf16 %v236, %v235
      %v265 = vpack.c.bf16 %v238, %v237
      %v266 = vpack.c.bf16 %v240, %v239
      %v267 = vpack.c.bf16 %v242, %v241
      %v268 = vpack.c.bf16 %v244, %v243
      %v269 = vpack.c.bf16 %v246, %v245
      %v270 = vpack.c.bf16 %v248, %v247
      %v271 = vpack.c.bf16 %v250, %v249
      %v272 = vpack.c.bf16 %v252, %v251
      %v273 = vpack.c.bf16 %v254, %v253
      %v274 = vpack.c.bf16 %v256, %v255
      %v275 = vpack.c.bf16 %v258, %v257
      %v276 = vpack.c.bf16 %v260, %v259
      %v277 = vld [vmem:[%s1] sm:$0xff]
      %v278 = vld [vmem:[%s1 + $0x8] sm:$0xff]
      %v279 = vld [vmem:[%s1 + $0x10] sm:$0xff]
      %v280 = vld [vmem:[%s1 + $0x18] sm:$0xff]
      %v281 = vld [vmem:[%s1 + $0x20] sm:$0xff]
      %v282 = vld [vmem:[%s1 + $0x28] sm:$0xff]
      %v283 = vld [vmem:[%s1 + $0x30] sm:$0xff]
      %v284 = vld [vmem:[%s1 + $0x38] sm:$0xff]
      %v285 = vld [vmem:[%s2] sm:$0x3]
      %v287 = vlaneseq
      %v288 = vshrl.u32 %v287, 7
      %v289 = vsub.s32 0, %v288
      %v290 = vrot.slane %v285, %v289
      %v291 = vlaneseq
      %v292 = vshrl.u32 %v291, 7
      %v293 = vsub.s32 1, %v292
      %v294 = vrot.slane %v285, %v293
      %v305 = vunpack.c.l.b16 %v277
      %v306 = vunpack.c.h.b16 %v277
      %v307 = vunpack.c.l.b16 %v278
      %v308 = vunpack.c.h.b16 %v278
      %v309 = vunpack.c.l.b16 %v279
      %v310 = vunpack.c.h.b16 %v279
      %v311 = vunpack.c.l.b16 %v280
      %v312 = vunpack.c.h.b16 %v280
      %v313 = vunpack.c.l.b16 %v281
      %v314 = vunpack.c.h.b16 %v281
      %v315 = vunpack.c.l.b16 %v282
      %v316 = vunpack.c.h.b16 %v282
      %v317 = vunpack.c.l.b16 %v283
      %v318 = vunpack.c.h.b16 %v283
      %v319 = vunpack.c.l.b16 %v284
      %v320 = vunpack.c.h.b16 %v284
      %v321 = vpack.c.b16 %v307, %v305
      %v322 = vpack.c.b16 %v308, %v306
      %v323 = vpack.c.b16 %v311, %v309
      %v324 = vpack.c.b16 %v312, %v310
      %v325 = vpack.c.b16 %v315, %v313
      %v326 = vpack.c.b16 %v316, %v314
      %v327 = vpack.c.b16 %v319, %v317
      %v328 = vpack.c.b16 %v320, %v318
      %vm337 = vcmask 523264
      %v339 = vsel %vm337, %v261, 0
      %v342 = vsel %vm337, %v262, 0
      %v345 = vsel %vm337, %v263, 0
      %v348 = vsel %vm337, %v264, 0
      %v351 = vsel %vm337, %v265, 0
      %v354 = vsel %vm337, %v266, 0
      %v357 = vsel %vm337, %v267, 0
      %v360 = vsel %vm337, %v268, 0
      %v363 = vsel %vm337, %v269, 0
      %v366 = vsel %vm337, %v270, 0
      %v369 = vsel %vm337, %v271, 0
      %v372 = vsel %vm337, %v272, 0
      %v375 = vsel %vm337, %v273, 0
      %v378 = vsel %vm337, %v274, 0
      %v381 = vsel %vm337, %v275, 0
      %v384 = vsel %vm337, %v276, 0
      %386 = vmatprep.subr.bf16.mxu0 0
      %387 = vmatpush1.bf16.msra.mxu0 0
      %388 = vmatprep.subr.bf16.mxu0 0
      %389 = vmatpush1.bf16.msra.mxu0 0
      %390 = vmatprep.subr.bf16.mxu0 0
      %391 = vmatpush1.bf16.msra.mxu0 0
      %392 = vmatprep.subr.bf16.mxu0 0
      %393 = vmatpush1.bf16.msra.mxu0 0
      %394 = vmatprep.subr.bf16.mxu0 %v328
      %395 = vmatpush1.bf16.msra.mxu0 %v327
      %396 = vmatprep.subr.bf16.mxu0 %v326
      %397 = vmatpush1.bf16.msra.mxu0 %v325
      %398 = vmatprep.subr.bf16.mxu0 %v324
      %399 = vmatpush1.bf16.msra.mxu0 %v323
      %400 = vmatprep.subr.bf16.mxu0 %v322
      %401 = vmatpush1.bf16.msra.mxu0 %v321
      %402 = vmatprep.subr.bf16.mxu0 0
      %403 = vmatpush2.bf16.msra.mxu0 0
      %404 = vmatprep.subr.bf16.mxu0 0
      %405 = vmatpush2.bf16.msra.mxu0 0
      %406 = vmatprep.subr.bf16.mxu0 0
      %407 = vmatpush2.bf16.msra.mxu0 0
      %408 = vmatprep.subr.bf16.mxu0 0
      %409 = vmatpush2.bf16.msra.mxu0 0
      %410 = vmatprep.subr.bf16.mxu0 0
      %411 = vmatpush2.bf16.msra.mxu0 0
      %412 = vmatprep.subr.bf16.mxu0 0
      %413 = vmatpush2.bf16.msra.mxu0 0
      %414 = vmatprep.subr.bf16.mxu0 0
      %415 = vmatpush2.bf16.msra.mxu0 0
      %416 = vmatprep.subr.bf16.mxu0 0
      %417 = vmatpush2.bf16.msra.mxu0 0
      %418 = vmatprep.mubr.bf16.mxu0 0
      %419 = vmatmul.mubr.bf16.gmra.mxu0 %v339
      %v420 = vpop.f32.mrf.mxu0
      %v421 = vadd.f32 %v290, %v420
      %v422 = vpop.f32.mrf.mxu0
      %v423 = vadd.f32 %v294, %v422
      %v424 = vpop.f32.mrf.mxu0
      %v425 = vadd.f32 %v290, %v424
      %v426 = vpop.f32.mrf.mxu0
      %v427 = vadd.f32 %v294, %v426
      %428 = vmatprep.mubr.bf16.mxu0 0
      %429 = vmatmul.mubr.bf16.gmra.mxu0 %v342
      %v430 = vpop.f32.mrf.mxu0
      %v431 = vadd.f32 %v290, %v430
      %v432 = vpop.f32.mrf.mxu0
      %v433 = vadd.f32 %v294, %v432
      %v434 = vpop.f32.mrf.mxu0
      %v435 = vadd.f32 %v290, %v434
      %v436 = vpop.f32.mrf.mxu0
      %v437 = vadd.f32 %v294, %v436
      %438 = vmatprep.mubr.bf16.mxu0 0
      %439 = vmatmul.mubr.bf16.gmra.mxu0 %v345
      %v440 = vpop.f32.mrf.mxu0
      %v441 = vadd.f32 %v290, %v440
      %v442 = vpop.f32.mrf.mxu0
      %v443 = vadd.f32 %v294, %v442
      %v444 = vpop.f32.mrf.mxu0
      %v445 = vadd.f32 %v290, %v444
      %v446 = vpop.f32.mrf.mxu0
      %v447 = vadd.f32 %v294, %v446
      %448 = vmatprep.mubr.bf16.mxu0 0
      %449 = vmatmul.mubr.bf16.gmra.mxu0 %v348
      %v450 = vpop.f32.mrf.mxu0
      %v451 = vadd.f32 %v290, %v450
      %v452 = vpop.f32.mrf.mxu0
      %v453 = vadd.f32 %v294, %v452
      %v454 = vpop.f32.mrf.mxu0
      %v455 = vadd.f32 %v290, %v454
      %v456 = vpop.f32.mrf.mxu0
      %v457 = vadd.f32 %v294, %v456
      %458 = vmatprep.mubr.bf16.mxu0 0
      %459 = vmatmul.mubr.bf16.gmra.mxu0 %v351
      %v460 = vpop.f32.mrf.mxu0
      %v461 = vadd.f32 %v290, %v460
      %v462 = vpop.f32.mrf.mxu0
      %v463 = vadd.f32 %v294, %v462
      %v464 = vpop.f32.mrf.mxu0
      %v465 = vadd.f32 %v290, %v464
      %v466 = vpop.f32.mrf.mxu0
      %v467 = vadd.f32 %v294, %v466
      %468 = vmatprep.mubr.bf16.mxu0 0
      %469 = vmatmul.mubr.bf16.gmra.mxu0 %v354
      %v470 = vpop.f32.mrf.mxu0
      %v471 = vadd.f32 %v290, %v470
      %v472 = vpop.f32.mrf.mxu0
      %v473 = vadd.f32 %v294, %v472
      %v474 = vpop.f32.mrf.mxu0
      %v475 = vadd.f32 %v290, %v474
      %v476 = vpop.f32.mrf.mxu0
      %v477 = vadd.f32 %v294, %v476
      %478 = vmatprep.mubr.bf16.mxu0 0
      %479 = vmatmul.mubr.bf16.gmra.mxu0 %v357
      %v480 = vpop.f32.mrf.mxu0
      %v481 = vadd.f32 %v290, %v480
      %v482 = vpop.f32.mrf.mxu0
      %v483 = vadd.f32 %v294, %v482
      %v484 = vpop.f32.mrf.mxu0
      %v485 = vadd.f32 %v290, %v484
      %v486 = vpop.f32.mrf.mxu0
      %v487 = vadd.f32 %v294, %v486
      %488 = vmatprep.mubr.bf16.mxu0 0
      %489 = vmatmul.mubr.bf16.gmra.mxu0 %v360
      %v490 = vpop.f32.mrf.mxu0
      %v491 = vadd.f32 %v290, %v490
      %v492 = vpop.f32.mrf.mxu0
      %v493 = vadd.f32 %v294, %v492
      %v494 = vpop.f32.mrf.mxu0
      %v495 = vadd.f32 %v290, %v494
      %v496 = vpop.f32.mrf.mxu0
      %v497 = vadd.f32 %v294, %v496
      %498 = vmatprep.mubr.bf16.mxu0 0
      %499 = vmatmul.mubr.bf16.gmra.mxu0 %v363
      %v500 = vpop.f32.mrf.mxu0
      %v501 = vadd.f32 %v290, %v500
      %v502 = vpop.f32.mrf.mxu0
      %v503 = vadd.f32 %v294, %v502
      %v504 = vpop.f32.mrf.mxu0
      %v505 = vadd.f32 %v290, %v504
      %v506 = vpop.f32.mrf.mxu0
      %v507 = vadd.f32 %v294, %v506
      %508 = vmatprep.mubr.bf16.mxu0 0
      %509 = vmatmul.mubr.bf16.gmra.mxu0 %v366
      %v510 = vpop.f32.mrf.mxu0
      %v511 = vadd.f32 %v290, %v510
      %v512 = vpop.f32.mrf.mxu0
      %v513 = vadd.f32 %v294, %v512
      %v514 = vpop.f32.mrf.mxu0
      %v515 = vadd.f32 %v290, %v514
      %v516 = vpop.f32.mrf.mxu0
      %v517 = vadd.f32 %v294, %v516
      %518 = vmatprep.mubr.bf16.mxu0 0
      %519 = vmatmul.mubr.bf16.gmra.mxu0 %v369
      %v520 = vpop.f32.mrf.mxu0
      %v521 = vadd.f32 %v290, %v520
      %v522 = vpop.f32.mrf.mxu0
      %v523 = vadd.f32 %v294, %v522
      %v524 = vpop.f32.mrf.mxu0
      %v525 = vadd.f32 %v290, %v524
      %v526 = vpop.f32.mrf.mxu0
      %v527 = vadd.f32 %v294, %v526
      %528 = vmatprep.mubr.bf16.mxu0 0
      %529 = vmatmul.mubr.bf16.gmra.mxu0 %v372
      %v530 = vpop.f32.mrf.mxu0
      %v531 = vadd.f32 %v290, %v530
      %v532 = vpop.f32.mrf.mxu0
      %v533 = vadd.f32 %v294, %v532
      %v534 = vpop.f32.mrf.mxu0
      %v535 = vadd.f32 %v290, %v534
      %v536 = vpop.f32.mrf.mxu0
      %v537 = vadd.f32 %v294, %v536
      %538 = vmatprep.mubr.bf16.mxu0 0
      %539 = vmatmul.mubr.bf16.gmra.mxu0 %v375
      %v540 = vpop.f32.mrf.mxu0
      %v541 = vadd.f32 %v290, %v540
      %v542 = vpop.f32.mrf.mxu0
      %v543 = vadd.f32 %v294, %v542
      %v544 = vpop.f32.mrf.mxu0
      %v545 = vadd.f32 %v290, %v544
      %v546 = vpop.f32.mrf.mxu0
      %v547 = vadd.f32 %v294, %v546
      %548 = vmatprep.mubr.bf16.mxu0 0
      %549 = vmatmul.mubr.bf16.gmra.mxu0 %v378
      %v550 = vpop.f32.mrf.mxu0
      %v551 = vadd.f32 %v290, %v550
      %v552 = vpop.f32.mrf.mxu0
      %v553 = vadd.f32 %v294, %v552
      %v554 = vpop.f32.mrf.mxu0
      %v555 = vadd.f32 %v290, %v554
      %v556 = vpop.f32.mrf.mxu0
      %v557 = vadd.f32 %v294, %v556
      %558 = vmatprep.mubr.bf16.mxu0 0
      %559 = vmatmul.mubr.bf16.gmra.mxu0 %v381
      %v560 = vpop.f32.mrf.mxu0
      %v561 = vadd.f32 %v290, %v560
      %v562 = vpop.f32.mrf.mxu0
      %v563 = vadd.f32 %v294, %v562
      %v564 = vpop.f32.mrf.mxu0
      %v565 = vadd.f32 %v290, %v564
      %v566 = vpop.f32.mrf.mxu0
      %v567 = vadd.f32 %v294, %v566
      %568 = vmatprep.mubr.bf16.mxu0 0
      %569 = vmatmul.mubr.bf16.gmra.mxu0 %v384
      %v570 = vpop.f32.mrf.mxu0
      %v571 = vadd.f32 %v290, %v570
      %v572 = vpop.f32.mrf.mxu0
      %v573 = vadd.f32 %v294, %v572
      %v574 = vpop.f32.mrf.mxu0
      %v575 = vadd.f32 %v290, %v574
      %v576 = vpop.f32.mrf.mxu0
      %v577 = vadd.f32 %v294, %v576
      %578 = vdwg.mxu0
      %v579 = vmax.f32 %v421, 0.0
      %v580 = vmax.f32 %v423, 0.0
      %v581 = vmax.f32 %v425, 0.0
      %v582 = vmax.f32 %v427, 0.0
      %v583 = vmax.f32 %v431, 0.0
      %v584 = vmax.f32 %v433, 0.0
      %v585 = vmax.f32 %v435, 0.0
      %v586 = vmax.f32 %v437, 0.0
      %v587 = vmax.f32 %v441, 0.0
      %v588 = vmax.f32 %v443, 0.0
      %v589 = vmax.f32 %v445, 0.0
      %v590 = vmax.f32 %v447, 0.0
      %v591 = vmax.f32 %v451, 0.0
      %v592 = vmax.f32 %v453, 0.0
      %v593 = vmax.f32 %v455, 0.0
      %v594 = vmax.f32 %v457, 0.0
      %v595 = vmax.f32 %v461, 0.0
      %v596 = vmax.f32 %v463, 0.0
      %v597 = vmax.f32 %v465, 0.0
      %v598 = vmax.f32 %v467, 0.0
      %v599 = vmax.f32 %v471, 0.0
      %v600 = vmax.f32 %v473, 0.0
      %v601 = vmax.f32 %v475, 0.0
      %v602 = vmax.f32 %v477, 0.0
      %v603 = vmax.f32 %v481, 0.0
      %v604 = vmax.f32 %v483, 0.0
      %v605 = vmax.f32 %v485, 0.0
      %v606 = vmax.f32 %v487, 0.0
      %v607 = vmax.f32 %v491, 0.0
      %v608 = vmax.f32 %v493, 0.0
      %v609 = vmax.f32 %v495, 0.0
      %v610 = vmax.f32 %v497, 0.0
      %v611 = vmax.f32 %v501, 0.0
      %v612 = vmax.f32 %v503, 0.0
      %v613 = vmax.f32 %v505, 0.0
      %v614 = vmax.f32 %v507, 0.0
      %v615 = vmax.f32 %v511, 0.0
      %v616 = vmax.f32 %v513, 0.0
      %v617 = vmax.f32 %v515, 0.0
      %v618 = vmax.f32 %v517, 0.0
      %v619 = vmax.f32 %v521, 0.0
      %v620 = vmax.f32 %v523, 0.0
      %v621 = vmax.f32 %v525, 0.0
      %v622 = vmax.f32 %v527, 0.0
      %v623 = vmax.f32 %v531, 0.0
      %v624 = vmax.f32 %v533, 0.0
      %v625 = vmax.f32 %v535, 0.0
      %v626 = vmax.f32 %v537, 0.0
      %v627 = vmax.f32 %v541, 0.0
      %v628 = vmax.f32 %v543, 0.0
      %v629 = vmax.f32 %v545, 0.0
      %v630 = vmax.f32 %v547, 0.0
      %v631 = vmax.f32 %v551, 0.0
      %v632 = vmax.f32 %v553, 0.0
      %v633 = vmax.f32 %v555, 0.0
      %v634 = vmax.f32 %v557, 0.0
      %v635 = vmax.f32 %v561, 0.0
      %v636 = vmax.f32 %v563, 0.0
      %v637 = vmax.f32 %v565, 0.0
      %v638 = vmax.f32 %v567, 0.0
      %v639 = vmax.f32 %v571, 0.0
      %v640 = vmax.f32 %v573, 0.0
      %v641 = vmax.f32 %v575, 0.0
      %v642 = vmax.f32 %v577, 0.0
      %v643 = vpack.c.bf16 %v581, %v579
      %v644 = vpack.c.bf16 %v582, %v580
      %v645 = vpack.c.bf16 %v585, %v583
      %v646 = vpack.c.bf16 %v586, %v584
      %v647 = vpack.c.bf16 %v589, %v587
      %v648 = vpack.c.bf16 %v590, %v588
      %v649 = vpack.c.bf16 %v593, %v591
      %v650 = vpack.c.bf16 %v594, %v592
      %v651 = vpack.c.bf16 %v597, %v595
      %v652 = vpack.c.bf16 %v598, %v596
      %v653 = vpack.c.bf16 %v601, %v599
      %v654 = vpack.c.bf16 %v602, %v600
      %v655 = vpack.c.bf16 %v605, %v603
      %v656 = vpack.c.bf16 %v606, %v604
      %v657 = vpack.c.bf16 %v609, %v607
      %v658 = vpack.c.bf16 %v610, %v608
      %v659 = vpack.c.bf16 %v613, %v611
      %v660 = vpack.c.bf16 %v614, %v612
      %v661 = vpack.c.bf16 %v617, %v615
      %v662 = vpack.c.bf16 %v618, %v616
      %v663 = vpack.c.bf16 %v621, %v619
      %v664 = vpack.c.bf16 %v622, %v620
      %v665 = vpack.c.bf16 %v625, %v623
      %v666 = vpack.c.bf16 %v626, %v624
      %v667 = vpack.c.bf16 %v629, %v627
      %v668 = vpack.c.bf16 %v630, %v628
      %v669 = vpack.c.bf16 %v633, %v631
      %v670 = vpack.c.bf16 %v634, %v632
      %v671 = vpack.c.bf16 %v637, %v635
      %v672 = vpack.c.bf16 %v638, %v636
      %v673 = vpack.c.bf16 %v641, %v639
      %v674 = vpack.c.bf16 %v642, %v640
      %v675 = vld [vmem:[%s3] sm:$0xf]
      %v676 = vld [vmem:[%s3 + $0x4] sm:$0xf]
      %v677 = vld [vmem:[%s3 + $0x8] sm:$0xf]
      %v678 = vld [vmem:[%s3 + $0xc] sm:$0xf]
      %v679 = vld [vmem:[%s3 + $0x10] sm:$0xf]
      %v680 = vld [vmem:[%s3 + $0x14] sm:$0xf]
      %v681 = vld [vmem:[%s3 + $0x18] sm:$0xf]
      %v682 = vld [vmem:[%s3 + $0x1c] sm:$0xf]
      %v683 = vld [vmem:[%s3 + $0x20] sm:$0xf]
      %v684 = vld [vmem:[%s3 + $0x24] sm:$0xf]
      %v685 = vld [vmem:[%s3 + $0x28] sm:$0xf]
      %v686 = vld [vmem:[%s3 + $0x2c] sm:$0xf]
      %v687 = vld [vmem:[%s3 + $0x30] sm:$0xf]
      %v688 = vld [vmem:[%s3 + $0x34] sm:$0xf]
      %v689 = vld [vmem:[%s3 + $0x38] sm:$0xf]
      %v690 = vld [vmem:[%s3 + $0x3c] sm:$0xf]
      %v691 = vld [vmem:[%s3 + $0x40] sm:$0xf]
      %v692 = vld [vmem:[%s3 + $0x44] sm:$0xf]
      %v693 = vld [vmem:[%s3 + $0x48] sm:$0xf]
      %v694 = vld [vmem:[%s3 + $0x4c] sm:$0xf]
      %v695 = vld [vmem:[%s3 + $0x50] sm:$0xf]
      %v696 = vld [vmem:[%s3 + $0x54] sm:$0xf]
      %v697 = vld [vmem:[%s3 + $0x58] sm:$0xf]
      %v698 = vld [vmem:[%s3 + $0x5c] sm:$0xf]
      %v699 = vld [vmem:[%s3 + $0x60] sm:$0xf]
      %v700 = vld [vmem:[%s3 + $0x64] sm:$0xf]
      %v701 = vld [vmem:[%s3 + $0x68] sm:$0xf]
      %v702 = vld [vmem:[%s3 + $0x6c] sm:$0xf]
      %v703 = vld [vmem:[%s3 + $0x70] sm:$0xf]
      %v704 = vld [vmem:[%s3 + $0x74] sm:$0xf]
      %v705 = vld [vmem:[%s3 + $0x78] sm:$0xf]
      %v706 = vld [vmem:[%s3 + $0x7c] sm:$0xf]
      %v707 = vld [vmem:[%s4] sm:$0x1]
      %v709 = vlaneseq
      %v710 = vshrl.u32 %v709, 7
      %v711 = vsub.s32 0, %v710
      %v712 = vrot.slane %v707, %v711
      %v746 = vunpack.c.l.b16 %v675
      %v747 = vunpack.c.l.b16 %v676
      %v748 = vunpack.c.l.b16 %v677
      %v749 = vunpack.c.l.b16 %v678
      %v750 = vunpack.c.l.b16 %v679
      %v751 = vunpack.c.l.b16 %v680
      %v752 = vunpack.c.l.b16 %v681
      %v753 = vunpack.c.l.b16 %v682
      %v754 = vunpack.c.l.b16 %v683
      %v755 = vunpack.c.l.b16 %v684
      %v756 = vunpack.c.l.b16 %v685
      %v757 = vunpack.c.l.b16 %v686
      %v758 = vunpack.c.l.b16 %v687
      %v759 = vunpack.c.l.b16 %v688
      %v760 = vunpack.c.l.b16 %v689
      %v761 = vunpack.c.l.b16 %v690
      %v762 = vunpack.c.l.b16 %v691
      %v763 = vunpack.c.l.b16 %v692
      %v764 = vunpack.c.l.b16 %v693
      %v765 = vunpack.c.l.b16 %v694
      %v766 = vunpack.c.l.b16 %v695
      %v767 = vunpack.c.l.b16 %v696
      %v768 = vunpack.c.l.b16 %v697
      %v769 = vunpack.c.l.b16 %v698
      %v770 = vunpack.c.l.b16 %v699
      %v771 = vunpack.c.l.b16 %v700
      %v772 = vunpack.c.l.b16 %v701
      %v773 = vunpack.c.l.b16 %v702
      %v774 = vunpack.c.l.b16 %v703
      %v775 = vunpack.c.l.b16 %v704
      %v776 = vunpack.c.l.b16 %v705
      %v777 = vunpack.c.l.b16 %v706
      %v778 = vpack.c.b16 %v747, %v746
      %v779 = vpack.c.b16 %v749, %v748
      %v780 = vpack.c.b16 %v751, %v750
      %v781 = vpack.c.b16 %v753, %v752
      %v782 = vpack.c.b16 %v755, %v754
      %v783 = vpack.c.b16 %v757, %v756
      %v784 = vpack.c.b16 %v759, %v758
      %v785 = vpack.c.b16 %v761, %v760
      %v786 = vpack.c.b16 %v763, %v762
      %v787 = vpack.c.b16 %v765, %v764
      %v788 = vpack.c.b16 %v767, %v766
      %v789 = vpack.c.b16 %v769, %v768
      %v790 = vpack.c.b16 %v771, %v770
      %v791 = vpack.c.b16 %v773, %v772
      %v792 = vpack.c.b16 %v775, %v774
      %v793 = vpack.c.b16 %v777, %v776
      %810 = vmatprep.subr.bf16.mxu0 0
      %811 = vmatpush1.bf16.msra.mxu0 %v785
      %812 = vmatprep.subr.bf16.mxu0 0
      %813 = vmatpush1.bf16.msra.mxu0 %v784
      %814 = vmatprep.subr.bf16.mxu0 0
      %815 = vmatpush1.bf16.msra.mxu0 %v783
      %816 = vmatprep.subr.bf16.mxu0 0
      %817 = vmatpush1.bf16.msra.mxu0 %v782
      %818 = vmatprep.subr.bf16.mxu0 0
      %819 = vmatpush1.bf16.msra.mxu0 %v781
      %820 = vmatprep.subr.bf16.mxu0 0
      %821 = vmatpush1.bf16.msra.mxu0 %v780
      %822 = vmatprep.subr.bf16.mxu0 0
      %823 = vmatpush1.bf16.msra.mxu0 %v779
      %824 = vmatprep.subr.bf16.mxu0 0
      %825 = vmatpush1.bf16.msra.mxu0 %v778
      %826 = vmatprep.subr.bf16.mxu0 0
      %827 = vmatpush2.bf16.msra.mxu0 %v793
      %828 = vmatprep.subr.bf16.mxu0 0
      %829 = vmatpush2.bf16.msra.mxu0 %v792
      %830 = vmatprep.subr.bf16.mxu0 0
      %831 = vmatpush2.bf16.msra.mxu0 %v791
      %832 = vmatprep.subr.bf16.mxu0 0
      %833 = vmatpush2.bf16.msra.mxu0 %v790
      %834 = vmatprep.subr.bf16.mxu0 0
      %835 = vmatpush2.bf16.msra.mxu0 %v789
      %836 = vmatprep.subr.bf16.mxu0 0
      %837 = vmatpush2.bf16.msra.mxu0 %v788
      %838 = vmatprep.subr.bf16.mxu0 0
      %839 = vmatpush2.bf16.msra.mxu0 %v787
      %840 = vmatprep.subr.bf16.mxu0 0
      %841 = vmatpush2.bf16.msra.mxu0 %v786
      %842 = vmatprep.mubr.bf16.mxu0 %v644
      %843 = vmatmul.mubr.bf16.gmra.mxu0 %v643
      %v844 = vpop.f32.mrf.mxu0
      %v845 = vadd.f32 %v712, %v844
      %v846 = vpop.f32.mrf.mxu0
      %v847 = vpop.f32.mrf.mxu0
      %v848 = vadd.f32 %v712, %v847
      %v849 = vpop.f32.mrf.mxu0
      %850 = vmatprep.mubr.bf16.mxu0 %v646
      %851 = vmatmul.mubr.bf16.gmra.mxu0 %v645
      %v852 = vpop.f32.mrf.mxu0
      %v853 = vadd.f32 %v712, %v852
      %v854 = vpop.f32.mrf.mxu0
      %v855 = vpop.f32.mrf.mxu0
      %v856 = vadd.f32 %v712, %v855
      %v857 = vpop.f32.mrf.mxu0
      %858 = vmatprep.mubr.bf16.mxu0 %v648
      %859 = vmatmul.mubr.bf16.gmra.mxu0 %v647
      %v860 = vpop.f32.mrf.mxu0
      %v861 = vadd.f32 %v712, %v860
      %v862 = vpop.f32.mrf.mxu0
      %v863 = vpop.f32.mrf.mxu0
      %v864 = vadd.f32 %v712, %v863
      %v865 = vpop.f32.mrf.mxu0
      %866 = vmatprep.mubr.bf16.mxu0 %v650
      %867 = vmatmul.mubr.bf16.gmra.mxu0 %v649
      %v868 = vpop.f32.mrf.mxu0
      %v869 = vadd.f32 %v712, %v868
      %v870 = vpop.f32.mrf.mxu0
      %v871 = vpop.f32.mrf.mxu0
      %v872 = vadd.f32 %v712, %v871
      %v873 = vpop.f32.mrf.mxu0
      %874 = vmatprep.mubr.bf16.mxu0 %v652
      %875 = vmatmul.mubr.bf16.gmra.mxu0 %v651
      %v876 = vpop.f32.mrf.mxu0
      %v877 = vadd.f32 %v712, %v876
      %v878 = vpop.f32.mrf.mxu0
      %v879 = vpop.f32.mrf.mxu0
      %v880 = vadd.f32 %v712, %v879
      %v881 = vpop.f32.mrf.mxu0
      %882 = vmatprep.mubr.bf16.mxu0 %v654
      %883 = vmatmul.mubr.bf16.gmra.mxu0 %v653
      %v884 = vpop.f32.mrf.mxu0
      %v885 = vadd.f32 %v712, %v884
      %v886 = vpop.f32.mrf.mxu0
      %v887 = vpop.f32.mrf.mxu0
      %v888 = vadd.f32 %v712, %v887
      %v889 = vpop.f32.mrf.mxu0
      %890 = vmatprep.mubr.bf16.mxu0 %v656
      %891 = vmatmul.mubr.bf16.gmra.mxu0 %v655
      %v892 = vpop.f32.mrf.mxu0
      %v893 = vadd.f32 %v712, %v892
      %v894 = vpop.f32.mrf.mxu0
      %v895 = vpop.f32.mrf.mxu0
      %v896 = vadd.f32 %v712, %v895
      %v897 = vpop.f32.mrf.mxu0
      %898 = vmatprep.mubr.bf16.mxu0 %v658
      %899 = vmatmul.mubr.bf16.gmra.mxu0 %v657
      %v900 = vpop.f32.mrf.mxu0
      %v901 = vadd.f32 %v712, %v900
      %v902 = vpop.f32.mrf.mxu0
      %v903 = vpop.f32.mrf.mxu0
      %v904 = vadd.f32 %v712, %v903
      %v905 = vpop.f32.mrf.mxu0
      %906 = vmatprep.mubr.bf16.mxu0 %v660
      %907 = vmatmul.mubr.bf16.gmra.mxu0 %v659
      %v908 = vpop.f32.mrf.mxu0
      %v909 = vadd.f32 %v712, %v908
      %v910 = vpop.f32.mrf.mxu0
      %v911 = vpop.f32.mrf.mxu0
      %v912 = vadd.f32 %v712, %v911
      %v913 = vpop.f32.mrf.mxu0
      %914 = vmatprep.mubr.bf16.mxu0 %v662
      %915 = vmatmul.mubr.bf16.gmra.mxu0 %v661
      %v916 = vpop.f32.mrf.mxu0
      %v917 = vadd.f32 %v712, %v916
      %v918 = vpop.f32.mrf.mxu0
      %v919 = vpop.f32.mrf.mxu0
      %v920 = vadd.f32 %v712, %v919
      %v921 = vpop.f32.mrf.mxu0
      %922 = vmatprep.mubr.bf16.mxu0 %v664
      %923 = vmatmul.mubr.bf16.gmra.mxu0 %v663
      %v924 = vpop.f32.mrf.mxu0
      %v925 = vadd.f32 %v712, %v924
      %v926 = vpop.f32.mrf.mxu0
      %v927 = vpop.f32.mrf.mxu0
      %v928 = vadd.f32 %v712, %v927
      %v929 = vpop.f32.mrf.mxu0
      %930 = vmatprep.mubr.bf16.mxu0 %v666
      %931 = vmatmul.mubr.bf16.gmra.mxu0 %v665
      %v932 = vpop.f32.mrf.mxu0
      %v933 = vadd.f32 %v712, %v932
      %v934 = vpop.f32.mrf.mxu0
      %v935 = vpop.f32.mrf.mxu0
      %v936 = vadd.f32 %v712, %v935
      %v937 = vpop.f32.mrf.mxu0
      %938 = vmatprep.mubr.bf16.mxu0 %v668
      %939 = vmatmul.mubr.bf16.gmra.mxu0 %v667
      %v940 = vpop.f32.mrf.mxu0
      %v941 = vadd.f32 %v712, %v940
      %v942 = vpop.f32.mrf.mxu0
      %v943 = vpop.f32.mrf.mxu0
      %v944 = vadd.f32 %v712, %v943
      %v945 = vpop.f32.mrf.mxu0
      %946 = vmatprep.mubr.bf16.mxu0 %v670
      %947 = vmatmul.mubr.bf16.gmra.mxu0 %v669
      %v948 = vpop.f32.mrf.mxu0
      %v949 = vadd.f32 %v712, %v948
      %v950 = vpop.f32.mrf.mxu0
      %v951 = vpop.f32.mrf.mxu0
      %v952 = vadd.f32 %v712, %v951
      %v953 = vpop.f32.mrf.mxu0
      %954 = vmatprep.mubr.bf16.mxu0 %v672
      %955 = vmatmul.mubr.bf16.gmra.mxu0 %v671
      %v956 = vpop.f32.mrf.mxu0
      %v957 = vadd.f32 %v712, %v956
      %v958 = vpop.f32.mrf.mxu0
      %v959 = vpop.f32.mrf.mxu0
      %v960 = vadd.f32 %v712, %v959
      %v961 = vpop.f32.mrf.mxu0
      %962 = vmatprep.mubr.bf16.mxu0 %v674
      %963 = vmatmul.mubr.bf16.gmra.mxu0 %v673
      %v964 = vpop.f32.mrf.mxu0
      %v965 = vadd.f32 %v712, %v964
      %v966 = vpop.f32.mrf.mxu0
      %v967 = vpop.f32.mrf.mxu0
      %v968 = vadd.f32 %v712, %v967
      %v969 = vpop.f32.mrf.mxu0
      %970 = vdwg.mxu0
      %vm971 = vcmask 261120
      %972 = vst.msk [vmem:[%s226] sm:$0xff] %vm971, %v845
      %973 = vst.msk [vmem:[%s226 + $0x8] sm:$0xff] %vm971, %v848
      %974 = vst.msk [vmem:[%s226 + $0x10] sm:$0xff] %vm971, %v853
      %975 = vst.msk [vmem:[%s226 + $0x18] sm:$0xff] %vm971, %v856
      %976 = vst.msk [vmem:[%s226 + $0x20] sm:$0xff] %vm971, %v861
      %977 = vst.msk [vmem:[%s226 + $0x28] sm:$0xff] %vm971, %v864
      %978 = vst.msk [vmem:[%s226 + $0x30] sm:$0xff] %vm971, %v869
      %979 = vst.msk [vmem:[%s226 + $0x38] sm:$0xff] %vm971, %v872
      %980 = vst.msk [vmem:[%s226 + $0x40] sm:$0xff] %vm971, %v877
      %981 = vst.msk [vmem:[%s226 + $0x48] sm:$0xff] %vm971, %v880
      %982 = vst.msk [vmem:[%s226 + $0x50] sm:$0xff] %vm971, %v885
      %983 = vst.msk [vmem:[%s226 + $0x58] sm:$0xff] %vm971, %v888
      %984 = vst.msk [vmem:[%s226 + $0x60] sm:$0xff] %vm971, %v893
      %985 = vst.msk [vmem:[%s226 + $0x68] sm:$0xff] %vm971, %v896
      %986 = vst.msk [vmem:[%s226 + $0x70] sm:$0xff] %vm971, %v901
      %987 = vst.msk [vmem:[%s226 + $0x78] sm:$0xff] %vm971, %v904
      %988 = vst.msk [vmem:[%s226 + $0x80] sm:$0xff] %vm971, %v909
      %989 = vst.msk [vmem:[%s226 + $0x88] sm:$0xff] %vm971, %v912
      %990 = vst.msk [vmem:[%s226 + $0x90] sm:$0xff] %vm971, %v917
      %991 = vst.msk [vmem:[%s226 + $0x98] sm:$0xff] %vm971, %v920
      %992 = vst.msk [vmem:[%s226 + $0xa0] sm:$0xff] %vm971, %v925
      %993 = vst.msk [vmem:[%s226 + $0xa8] sm:$0xff] %vm971, %v928
      %994 = vst.msk [vmem:[%s226 + $0xb0] sm:$0xff] %vm971, %v933
      %995 = vst.msk [vmem:[%s226 + $0xb8] sm:$0xff] %vm971, %v936
      %996 = vst.msk [vmem:[%s226 + $0xc0] sm:$0xff] %vm971, %v941
      %997 = vst.msk [vmem:[%s226 + $0xc8] sm:$0xff] %vm971, %v944
      %998 = vst.msk [vmem:[%s226 + $0xd0] sm:$0xff] %vm971, %v949
      %999 = vst.msk [vmem:[%s226 + $0xd8] sm:$0xff] %vm971, %v952
      %1000 = vst.msk [vmem:[%s226 + $0xe0] sm:$0xff] %vm971, %v957
      %1001 = vst.msk [vmem:[%s226 + $0xe8] sm:$0xff] %vm971, %v960
      %1002 = vst.msk [vmem:[%s226 + $0xf0] sm:$0xff] %vm971, %v965
      %1003 = vst.msk [vmem:[%s226 + $0xf8] sm:$0xff] %vm971, %v968
      %s1004 = smul.u32 32, %s16
      %p1005 = scmp.lt.s32.totalorder %s1004, 63
      %s1006 = scalar_select %p1005, %s1004, 63
      %s1007 = smul.addr %s1006, 8
      %s1008 = scalar_lea.vmem %s5, %s1007
      // Predicated region
      $region41: #{two_layer_net.1} parent=39 // pred_check
        %p1009 = pneg %p144
      $region42: #{two_layer_net.1} parent=39 // pred_check_branch
        %1011 = sbr.rel (%p1009) target = $region44
      $region43: #{two_layer_net.1} parent=39 // pred_region
        %s1012 = smul.u32 32, %s16
      $region44: #{two_layer_net.1} parent=39 // pred_fallthru
        _
    $region40: #{two_layer_net.1} parent=5 // pred_fallthru
      _
    %p1013 = scmp.le.s32.totalorder 2, %s11
    // Predicated region
    $region45: #{two_layer_net.1} parent=5 // pred_check
      %p1014 = pneg %p1013
    $region46: #{two_layer_net.1} parent=5 // pred_check_branch
      %1016 = sbr.rel (%p1014) target = $region48
    $region47: #{two_layer_net.1} parent=5 // pred_region
      %s1017 = ssub.s32 %s11, 2
      // Predicated region
      $region49: #{two_layer_net.1} parent=47 // pred_check
        %p1018 = pneg %p150
      $region50: #{two_layer_net.1} parent=47 // pred_check_branch
        %1020 = sbr.rel (%p1018) target = $region52
      $region51: #{two_layer_net.1} parent=47 // pred_region
        %s1021 = smul.u32 32, %s17
        %p1022 = scmp.lt.s32.totalorder %s1021, 63
        %s1023 = scalar_select %p1022, %s1021, 63
        %s1024 = smul.addr %s1023, 8
        %s1025 = scalar_lea.vmem %s5, %s1024
      $region52: #{two_layer_net.1} parent=47 // pred_fallthru
        _
    $region48: #{two_layer_net.1} parent=5 // pred_fallthru
      _
  $region6: #{two_layer_net.1} parent=0 // loop_footer
    %s15 = sadd.s32 1, %s11
  $region7: #{two_layer_net.1} parent=0 // loop_footer_branch
    %10 = sbr.rel target = $region3
  $region8: #{two_layer_net.1} parent=0 // loop_exit
    _

</llo_original>
